<compile_context>
chip_gen: v6e
topology: v6e:2x2x1
jax: 0.10.0
libtpu: 0.0.40
codegen_flags: <defaults>
</compile_context>

<pallas_src>
import functools

import numpy as np
import jax
import jax.numpy as jnp
from jax import lax
from jax.experimental import pallas as pl
from jax.experimental.pallas import tpu as pltpu


LN_EPS = 1e-5                    # PyTorch nn.LayerNorm default
NEG_INF = -1e9
VMEM_LIMIT = 32 * 1024 * 1024    # explicit scoped-VMEM budget (safe on v5e/v6e/v7x)


def _cparams(sem):
    return pltpu.CompilerParams(dimension_semantics=sem,
                                vmem_limit_bytes=VMEM_LIMIT)


def _fit(dim, target):
    """Largest tile <= target that divides dim (falls back to full dim)."""
    t = min(dim, target)
    return t if dim % t == 0 else dim


# ---------------------------------------------------------------------------
# Kernel 1: tiled matmul  y = x @ w + b   (bf16 MXU inputs, f32 accumulation)
# ---------------------------------------------------------------------------

def _matmul_kernel(x_ref, w_ref, b_ref, o_ref, acc_ref):
    @pl.when(pl.program_id(2) == 0)
    def _():
        acc_ref[...] = jnp.zeros_like(acc_ref)

    acc_ref[...] += jnp.dot(x_ref[...].astype(jnp.bfloat16),
                            w_ref[...].astype(jnp.bfloat16),
                            preferred_element_type=jnp.float32)

    @pl.when(pl.program_id(2) == pl.num_programs(2) - 1)
    def _():
        o_ref[...] = acc_ref[...] + b_ref[...]


def linear(x2d, w_bf16, b_f32, *, tm=256, tn=256, tk=512):
    """x2d: (M, K) f32  @  w: (K, N) bf16  +  b: (N,) f32  ->  (M, N) f32."""
    M, K = x2d.shape
    N = w_bf16.shape[1]
    tm, tn, tk = _fit(M, tm), _fit(N, tn), _fit(K, tk)
    return pl.pallas_call(
        _matmul_kernel,
        out_shape=jax.ShapeDtypeStruct((M, N), jnp.float32),
        grid=(M // tm, N // tn, K // tk),
        in_specs=[
            pl.BlockSpec((tm, tk), lambda i, j, k: (i, k)),
            pl.BlockSpec((tk, tn), lambda i, j, k: (k, j)),
            pl.BlockSpec((1, tn), lambda i, j, k: (0, j)),
        ],
        out_specs=pl.BlockSpec((tm, tn), lambda i, j, k: (i, j)),
        scratch_shapes=[pltpu.VMEM((tm, tn), jnp.float32)],
        compiler_params=_cparams(("parallel", "parallel", "arbitrary")),
    )(x2d, w_bf16, b_f32.reshape(1, N))


# ---------------------------------------------------------------------------
# Kernel 2: multi-head attention, one batch element per grid point.
# q/k/v stay in the lane-dense (T, H*dh) layout; heads are sliced in-kernel and
# the result is written with a single lane-dense store.
# ---------------------------------------------------------------------------

def _attn_kernel(q_ref, k_ref, v_ref, m_ref, o_ref, *, n_heads, scale):
    D = q_ref.shape[2]
    dh = D // n_heads
    q = (q_ref[0] * scale).astype(jnp.bfloat16)   # (Tq, D), scale folded in once
    k = k_ref[0].astype(jnp.bfloat16)             # (Tk, D)
    v = v_ref[0].astype(jnp.bfloat16)             # (Tk, D)
    mask = m_ref[0]                               # (Tq, Tk) additive f32 mask

    outs = []
    for h in range(n_heads):                      # static unroll (n_heads is compile-time)
        lo, hi = h * dh, (h + 1) * dh
        qh, kh, vh = q[:, lo:hi], k[:, lo:hi], v[:, lo:hi]
        # scores: contract head dims directly (q @ k^T without materializing a transpose)
        s = lax.dot_general(qh, kh, (((1,), (1,)), ((), ())),
                            preferred_element_type=jnp.float32)
        s = s + mask
        s = s - jnp.max(s, axis=-1, keepdims=True)
        p = jnp.exp(s)
        p = p * pl.reciprocal(jnp.sum(p, axis=-1, keepdims=True), approx=True)
        outs.append(jnp.dot(p.astype(jnp.bfloat16), vh,
                            preferred_element_type=jnp.float32))
    o_ref[0] = jnp.concatenate(outs, axis=-1)     # one full-width store


def attention(q, k, v, mask_add, n_heads):
    """q: (B,Tq,D), k/v: (B,Tk,D), mask_add: (B,Tq,Tk) -> (B,Tq,D)."""
    B, Tq, D = q.shape
    Tk = k.shape[1]
    scale = 1.0 / float(np.sqrt(D // n_heads))
    return pl.pallas_call(
        functools.partial(_attn_kernel, n_heads=n_heads, scale=scale),
        out_shape=jax.ShapeDtypeStruct((B, Tq, D), jnp.float32),
        grid=(B,),
        in_specs=[
            pl.BlockSpec((1, Tq, D), lambda b: (b, 0, 0)),
            pl.BlockSpec((1, Tk, D), lambda b: (b, 0, 0)),
            pl.BlockSpec((1, Tk, D), lambda b: (b, 0, 0)),
            pl.BlockSpec((1, Tq, Tk), lambda b: (b, 0, 0)),
        ],
        out_specs=pl.BlockSpec((1, Tq, D), lambda b: (b, 0, 0)),
        compiler_params=_cparams(("parallel",)),
    )(q, k, v, mask_add)


# ---------------------------------------------------------------------------
# Kernel 3: fused  (out-projection  +  residual add  +  LayerNorm)
# ---------------------------------------------------------------------------

def _proj_res_ln_kernel(x_ref, w_ref, b_ref, r_ref, g_ref, bln_ref, o_ref, *, eps):
    y = jnp.dot(x_ref[...].astype(jnp.bfloat16), w_ref[...].astype(jnp.bfloat16),
                preferred_element_type=jnp.float32) + b_ref[...]
    z = r_ref[...] + y
    mean = jnp.mean(z, axis=-1, keepdims=True)
    var = jnp.mean(jnp.square(z - mean), axis=-1, keepdims=True)
    o_ref[...] = (z - mean) * lax.rsqrt(var + eps) * g_ref[...] + bln_ref[...]


def proj_residual_layernorm(x2d, w, b, resid2d, g, bln, *, tm=256):
    M, K = x2d.shape
    N = w.shape[1]
    tm = _fit(M, tm)
    return pl.pallas_call(
        functools.partial(_proj_res_ln_kernel, eps=LN_EPS),
        out_shape=jax.ShapeDtypeStruct((M, N), jnp.float32),
        grid=(M // tm,),
        in_specs=[
            pl.BlockSpec((tm, K), lambda i: (i, 0)),
            pl.BlockSpec((K, N), lambda i: (0, 0)),
            pl.BlockSpec((1, N), lambda i: (0, 0)),
            pl.BlockSpec((tm, N), lambda i: (i, 0)),
            pl.BlockSpec((1, N), lambda i: (0, 0)),
            pl.BlockSpec((1, N), lambda i: (0, 0)),
        ],
        out_specs=pl.BlockSpec((tm, N), lambda i: (i, 0)),
        compiler_params=_cparams(("parallel",)),
    )(x2d, w, b.reshape(1, N), resid2d, g.reshape(1, N), bln.reshape(1, N))


# ---------------------------------------------------------------------------
# Kernel 4: fused  (FFN1 + ReLU + FFN2  +  residual add  +  LayerNorm)
# ---------------------------------------------------------------------------

def _ffn_res_ln_kernel(x_ref, w1_ref, b1_ref, w2_ref, b2_ref, g_ref, bln_ref,
                       o_ref, *, eps):
    x = x_ref[...]
    h = jnp.dot(x.astype(jnp.bfloat16), w1_ref[...].astype(jnp.bfloat16),
                preferred_element_type=jnp.float32) + b1_ref[...]
    h = jnp.maximum(h, 0.0)
    y = jnp.dot(h.astype(jnp.bfloat16), w2_ref[...].astype(jnp.bfloat16),
                preferred_element_type=jnp.float32) + b2_ref[...]
    z = x + y
    mean = jnp.mean(z, axis=-1, keepdims=True)
    var = jnp.mean(jnp.square(z - mean), axis=-1, keepdims=True)
    o_ref[...] = (z - mean) * lax.rsqrt(var + eps) * g_ref[...] + bln_ref[...]


def ffn_residual_layernorm(x2d, w1, b1, w2, b2, g, bln, *, tm=256):
    M, D = x2d.shape
    F = w1.shape[1]
    tm = _fit(M, tm)
    return pl.pallas_call(
        functools.partial(_ffn_res_ln_kernel, eps=LN_EPS),
        out_shape=jax.ShapeDtypeStruct((M, D), jnp.float32),
        grid=(M // tm,),
        in_specs=[
            pl.BlockSpec((tm, D), lambda i: (i, 0)),
            pl.BlockSpec((D, F), lambda i: (0, 0)),
            pl.BlockSpec((1, F), lambda i: (0, 0)),
            pl.BlockSpec((F, D), lambda i: (0, 0)),
            pl.BlockSpec((1, D), lambda i: (0, 0)),
            pl.BlockSpec((1, D), lambda i: (0, 0)),
            pl.BlockSpec((1, D), lambda i: (0, 0)),
        ],
        out_specs=pl.BlockSpec((tm, D), lambda i: (i, 0)),
        compiler_params=_cparams(("parallel",)),
    )(x2d, w1, b1.reshape(1, F), w2, b2.reshape(1, D),
      g.reshape(1, D), bln.reshape(1, D))


# ---------------------------------------------------------------------------
# Model glue (plain JAX around the kernels)
# ---------------------------------------------------------------------------

def sinusoidal_pe(max_len, d_model):
    pos = np.arange(max_len)[:, None].astype(np.float32)
    i = np.arange(d_model)[None, :].astype(np.float32)
    angle = pos / np.power(10000.0, (2.0 * (i // 2)) / d_model)
    pe = np.zeros((max_len, d_model), dtype=np.float32)
    pe[:, 0::2] = np.sin(angle[:, 0::2])
    pe[:, 1::2] = np.cos(angle[:, 1::2])
    return jnp.asarray(pe)


def self_attention_block(p, x, mask_add, n_heads):
    B, T, D = x.shape
    qkv = linear(x.reshape(B * T, D), p["w_qkv"], p["b_qkv"])         # (B*T, 3D)
    q = qkv[:, :D].reshape(B, T, D)
    k = qkv[:, D:2 * D].reshape(B, T, D)
    v = qkv[:, 2 * D:].reshape(B, T, D)
    return attention(q, k, v, mask_add, n_heads)                      # (B, T, D)


def cross_attention_block(p, x_q, memory, mask_add, n_heads):
    B, Tq, D = x_q.shape
    Tk = memory.shape[1]
    q = linear(x_q.reshape(B * Tq, D), p["wq"], p["bq"]).reshape(B, Tq, D)
    kv = linear(memory.reshape(B * Tk, D), p["w_kv"], p["b_kv"])      # (B*Tk, 2D)
    k = kv[:, :D].reshape(B, Tk, D)
    v = kv[:, D:].reshape(B, Tk, D)
    return attention(q, k, v, mask_add, n_heads)


def encoder_layer(p, x, src_mask_add, n_heads):
    B, T, D = x.shape
    a = self_attention_block(p["self_attn"], x, src_mask_add, n_heads)
    x = proj_residual_layernorm(
        a.reshape(B * T, D), p["self_attn"]["wo"], p["self_attn"]["bo"],
        x.reshape(B * T, D), p["ln1_g"], p["ln1_b"]).reshape(B, T, D)
    x = ffn_residual_layernorm(
        x.reshape(B * T, D), p["ffn"]["w1"], p["ffn"]["b1"],
        p["ffn"]["w2"], p["ffn"]["b2"], p["ln2_g"], p["ln2_b"]).reshape(B, T, D)
    return x


def decoder_layer(p, y, memory, cross_mask_add, self_mask_add, n_heads):
    B, T, D = y.shape
    a = self_attention_block(p["self_attn"], y, self_mask_add, n_heads)
    y = proj_residual_layernorm(
        a.reshape(B * T, D), p["self_attn"]["wo"], p["self_attn"]["bo"],
        y.reshape(B * T, D), p["ln1_g"], p["ln1_b"]).reshape(B, T, D)
    c = cross_attention_block(p["cross_attn"], y, memory, cross_mask_add, n_heads)
    y = proj_residual_layernorm(
        c.reshape(B * T, D), p["cross_attn"]["wo"], p["cross_attn"]["bo"],
        y.reshape(B * T, D), p["ln2_g"], p["ln2_b"]).reshape(B, T, D)
    y = ffn_residual_layernorm(
        y.reshape(B * T, D), p["ffn"]["w1"], p["ffn"]["b1"],
        p["ffn"]["w2"], p["ffn"]["b2"], p["ln3_g"], p["ln3_b"]).reshape(B, T, D)
    return y


def transformer_forward(params, source, target, src_pad_idx, trg_pad_idx, n_heads):
    B, S = source.shape
    _, T = target.shape
    D = params["emb_src"].shape[1]

    # Masks (same semantics as the PyTorch src_mask / trg_mask helpers).
    smask = (source != src_pad_idx)[:, None, :]                     # (B,1,S) bool
    causal = jnp.tril(jnp.ones((T, T), dtype=bool))[None]           # (1,T,T) == (1 - triu(.,1))
    tmask = (target != trg_pad_idx)[:, None, :] & causal            # (B,T,T) bool

    neg = jnp.float32(NEG_INF)
    enc_self_mask = jnp.where(jnp.broadcast_to(smask, (B, S, S)), 0.0, neg).astype(jnp.float32)
    cross_mask = jnp.where(jnp.broadcast_to(smask, (B, T, S)), 0.0, neg).astype(jnp.float32)
    dec_self_mask = jnp.where(tmask, 0.0, neg).astype(jnp.float32)

    pe = params["pos_enc"]
    scale = jnp.sqrt(jnp.float32(D))

    # Embedding lookup + positional encoding add is glue (gather stays in XLA).
    # TODO(synk): a Pallas gather kernel (scalar-prefetch row ids + Element BlockSpec) could
    # replace jnp.take for large vocabularies; not worth it at these toy sizes.
    x = jnp.take(params["emb_src"], source, axis=0) * scale + pe[:S][None]
    y = jnp.take(params["emb_tgt"], target, axis=0) * scale + pe[:T][None]

    for lp in params["enc_layers"]:
        x = encoder_layer(lp, x, enc_self_mask, n_heads)
    memory = x

    for lp in params["dec_layers"]:
        y = decoder_layer(lp, y, memory, cross_mask, dec_self_mask, n_heads)

    # forward() returns the decoder output (generator is not applied in the reference forward).
    return y


# ---------------------------------------------------------------------------
# Deterministic parameter init (matmul weights stored in bf16 for the MXU path)
# ---------------------------------------------------------------------------

def _glorot(key, shape, dtype=jnp.bfloat16):
    lim = np.sqrt(6.0 / (shape[0] + shape[1]))
    return jax.random.uniform(key, shape, jnp.float32, -lim, lim).astype(dtype)


def _self_attn_params(key, d):
    kq, kk, kv, ko = jax.random.split(key, 4)
    w_qkv = jnp.concatenate(
        [_glorot(kq, (d, d)), _glorot(kk, (d, d)), _glorot(kv, (d, d))], axis=1)
    return {"w_qkv": w_qkv, "b_qkv": jnp.zeros((3 * d,), jnp.float32),
            "wo": _glorot(ko, (d, d)), "bo": jnp.zeros((d,), jnp.float32)}


def _cross_attn_params(key, d):
    kq, kk, kv, ko = jax.random.split(key, 4)
    return {"wq": _glorot(kq, (d, d)), "bq": jnp.zeros((d,), jnp.float32),
            "w_kv": jnp.concatenate([_glorot(kk, (d, d)), _glorot(kv, (d, d))], axis=1),
            "b_kv": jnp.zeros((2 * d,), jnp.float32),
            "wo": _glorot(ko, (d, d)), "bo": jnp.zeros((d,), jnp.float32)}


def _ffn_params(key, d_model, d_ff):
    k1, k2 = jax.random.split(key)
    return {"w1": _glorot(k1, (d_model, d_ff)), "b1": jnp.zeros((d_ff,), jnp.float32),
            "w2": _glorot(k2, (d_ff, d_model)), "b2": jnp.zeros((d_model,), jnp.float32)}


def init_params(key, vocab_src, vocab_tgt, d_model, d_ff, n_layers, max_len):
    keys = jax.random.split(key, 2 + 2 * n_layers)
    ones = jnp.ones((d_model,), jnp.float32)
    zeros = jnp.zeros((d_model,), jnp.float32)
    params = {
        "emb_src": 0.02 * jax.random.normal(keys[0], (vocab_src, d_model), jnp.float32),
        "emb_tgt": 0.02 * jax.random.normal(keys[1], (vocab_tgt, d_model), jnp.float32),
        "pos_enc": sinusoidal_pe(max_len, d_model),
        "enc_layers": [],
        "dec_layers": [],
    }
    for l in range(n_layers):
        k1, k2 = jax.random.split(keys[2 + l])
        params["enc_layers"].append({
            "self_attn": _self_attn_params(k1, d_model),
            "ffn": _ffn_params(k2, d_model, d_ff),
            "ln1_g": ones, "ln1_b": zeros, "ln2_g": ones, "ln2_b": zeros,
        })
    for l in range(n_layers):
        k1, k2, k3 = jax.random.split(keys[2 + n_layers + l], 3)
        params["dec_layers"].append({
            "self_attn": _self_attn_params(k1, d_model),
            "cross_attn": _cross_attn_params(k2, d_model),
            "ffn": _ffn_params(k3, d_model, d_ff),
            "ln1_g": ones, "ln1_b": zeros, "ln2_g": ones, "ln2_b": zeros,
            "ln3_g": ones, "ln3_b": zeros,
        })
    return params


# ---------------------------------------------------------------------------
# Main
# ---------------------------------------------------------------------------

if __name__ == "__main__":
    B, S_SRC, T_TGT = 2, 8, 8
    VOCAB_SRC, VOCAB_TGT = 32, 32
    D_MODEL, N_HEADS, D_FF, N_LAYERS = 32, 4, 64, 2
    SRC_PAD_IDX, TRG_PAD_IDX = 0, 0
    # TODO(synk): in production, pad d_model (=32 here) to a multiple of 128 lanes for
    # full vreg / MXU utilization; kept at the module's toy size for fidelity.

    root = jax.random.PRNGKey(0)
    kp, ks, kt = jax.random.split(root, 3)

    params = init_params(kp, VOCAB_SRC, VOCAB_TGT, D_MODEL, D_FF, N_LAYERS, max_len=64)

    source = jax.random.randint(ks, (B, S_SRC), 1, VOCAB_SRC, dtype=jnp.int32)
    target = jax.random.randint(kt, (B, T_TGT), 1, VOCAB_TGT, dtype=jnp.int32)
    # Introduce padding positions so the masks are exercised.
    source = source.at[:, -2:].set(SRC_PAD_IDX)
    target = target.at[:, -1:].set(TRG_PAD_IDX)

    fwd = jax.jit(lambda p, s, t: transformer_forward(
        p, s, t, SRC_PAD_IDX, TRG_PAD_IDX, N_HEADS))

    out = fwd(params, source, target)
    out = jax.block_until_ready(out)

    assert out.shape == (B, T_TGT, D_MODEL), out.shape
    assert jnp.all(jnp.isfinite(out))
    print("KERNEL_OK")
</pallas_src>

<mosaic_0001>
module attributes {stable_mosaic.version = 11 : i64} {
  func.func @_matmul_kernel(%arg0: i32, %arg1: i32, %arg2: i32, %arg3: memref<16x32xf32, #tpu.memory_space<vmem>>, %arg4: memref<32x96xbf16, #tpu.memory_space<vmem>>, %arg5: memref<1x96xf32, #tpu.memory_space<vmem>>, %arg6: memref<16x96xf32, #tpu.memory_space<vmem>>, %arg7: memref<16x96xf32, #tpu.memory_space<vmem>>) attributes {dimension_semantics = [#tpu.dimension_semantics<parallel>, #tpu.dimension_semantics<parallel>, #tpu.dimension_semantics<arbitrary>], iteration_bounds = array<i64: 1, 1, 1>, scalar_prefetch = 0 : i64, scratch_operands = 1 : i64, tpu.core_type = #tpu.core_type<tc>, window_params = [{transform_indices = @transform_0, window_bounds = array<i64: 16, 32>}, {transform_indices = @transform_1, window_bounds = array<i64: 32, 96>}, {transform_indices = @transform_2, window_bounds = array<i64: 1, 96>}, {transform_indices = @transform_3, window_bounds = array<i64: 16, 96>}]} {
    %c0_i32 = arith.constant 0 : i32
    %0 = arith.cmpi eq, %arg2, %c0_i32 : i32
    %1 = arith.extui %0 : i1 to i32
    %c0_i32_0 = arith.constant 0 : i32
    %2 = arith.cmpi ne, %1, %c0_i32_0 : i32
    scf.if %2 {
      %cst_10 = arith.constant 0.000000e+00 : f32
      %13 = vector.broadcast %cst_10 : f32 to vector<16x96xf32>
      %c0_11 = arith.constant 0 : index
      %c0_12 = arith.constant 0 : index
      %14 = vector.load %arg7[%c0_11, %c0_12] : memref<16x96xf32, #tpu.memory_space<vmem>>, vector<16x96xf32>
      tpu.vector_store %arg7[%c0_11, %c0_12], %13 {strides = array<i32>} : memref<16x96xf32, #tpu.memory_space<vmem>>, vector<16x96xf32>,
    } else {
    }
    %c0 = arith.constant 0 : index
    %c0_1 = arith.constant 0 : index
    %3 = vector.load %arg7[%c0, %c0_1] : memref<16x96xf32, #tpu.memory_space<vmem>>, vector<16x96xf32>
    %c0_2 = arith.constant 0 : index
    %c0_3 = arith.constant 0 : index
    %4 = vector.load %arg3[%c0_2, %c0_3] : memref<16x32xf32, #tpu.memory_space<vmem>>, vector<16x32xf32>
    %5 = arith.truncf %4 : vector<16x32xf32> to vector<16x32xbf16>
    %c0_4 = arith.constant 0 : index
    %c0_5 = arith.constant 0 : index
    %6 = vector.load %arg4[%c0_4, %c0_5] : memref<32x96xbf16, #tpu.memory_space<vmem>>, vector<32x96xbf16>
    %cst = arith.constant dense<0.000000e+00> : vector<16x96xf32>
    %7 = tpu.matmul %5, %6, %cst {dimension_numbers = #tpu.dot_dimension_numbers<[1], [0], [0], [1], [0, 0, 1, 1], [], []>} : vector<16x32xbf16>, vector<32x96xbf16>, vector<16x96xf32> -> vector<16x96xf32>
    %8 = arith.addf %3, %7 : vector<16x96xf32>
    %c0_6 = arith.constant 0 : index
    %c0_7 = arith.constant 0 : index
    %9 = vector.load %arg7[%c0_6, %c0_7] : memref<16x96xf32, #tpu.memory_space<vmem>>, vector<16x96xf32>
    tpu.vector_store %arg7[%c0_6, %c0_7], %8 {strides = array<i32>} : memref<16x96xf32, #tpu.memory_space<vmem>>, vector<16x96xf32>,
    %c0_i32_8 = arith.constant 0 : i32
    %10 = arith.cmpi eq, %arg2, %c0_i32_8 : i32
    %11 = arith.extui %10 : i1 to i32
    %c0_i32_9 = arith.constant 0 : i32
    %12 = arith.cmpi ne, %11, %c0_i32_9 : i32
    scf.if %12 {
      %c0_10 = arith.constant 0 : index
      %c0_11 = arith.constant 0 : index
      %13 = vector.load %arg7[%c0_10, %c0_11] : memref<16x96xf32, #tpu.memory_space<vmem>>, vector<16x96xf32>
      %c0_12 = arith.constant 0 : index
      %c0_13 = arith.constant 0 : index
      %14 = vector.load %arg5[%c0_12, %c0_13] : memref<1x96xf32, #tpu.memory_space<vmem>>, vector<1x96xf32>
      %15 = vector.broadcast %14 : vector<1x96xf32> to vector<16x96xf32>
      %16 = arith.addf %13, %15 : vector<16x96xf32>
      %c0_14 = arith.constant 0 : index
      %c0_15 = arith.constant 0 : index
      %17 = vector.load %arg6[%c0_14, %c0_15] : memref<16x96xf32, #tpu.memory_space<vmem>>, vector<16x96xf32>
      tpu.vector_store %arg6[%c0_14, %c0_15], %16 {strides = array<i32>} : memref<16x96xf32, #tpu.memory_space<vmem>>, vector<16x96xf32>,
    } else {
    }
    return
  }
  func.func @transform_0(%arg0: i32, %arg1: i32, %arg2: i32) -> (i32, i32) {
    %c0_i32 = arith.constant 0 : i32
    return %arg0, %arg2 : i32, i32
  }
  func.func @transform_1(%arg0: i32, %arg1: i32, %arg2: i32) -> (i32, i32) {
    %c0_i32 = arith.constant 0 : i32
    return %arg2, %arg1 : i32, i32
  }
  func.func @transform_2(%arg0: i32, %arg1: i32, %arg2: i32) -> (i32, i32) {
    %c0_i32 = arith.constant 0 : i32
    %c0_i32_0 = arith.constant 0 : i32
    return %c0_i32, %arg1 : i32, i32
  }
  func.func @transform_3(%arg0: i32, %arg1: i32, %arg2: i32) -> (i32, i32) {
    %c0_i32 = arith.constant 0 : i32
    return %arg0, %arg1 : i32, i32
  }
}

module attributes {stable_mosaic.version = 11 : i64} {
  func.func @_proj_res_ln_kernel(%arg0: i32, %arg1: memref<16x32xf32, #tpu.memory_space<vmem>>, %arg2: memref<32x32xbf16, #tpu.memory_space<vmem>>, %arg3: memref<1x32xf32, #tpu.memory_space<vmem>>, %arg4: memref<16x32xf32, #tpu.memory_space<vmem>>, %arg5: memref<1x32xf32, #tpu.memory_space<vmem>>, %arg6: memref<1x32xf32, #tpu.memory_space<vmem>>, %arg7: memref<16x32xf32, #tpu.memory_space<vmem>>) attributes {dimension_semantics = [#tpu.dimension_semantics<parallel>], iteration_bounds = array<i64: 1>, scalar_prefetch = 0 : i64, scratch_operands = 0 : i64, tpu.core_type = #tpu.core_type<tc>, window_params = [{transform_indices = @transform_0, window_bounds = array<i64: 16, 32>}, {pipeline_mode = #tpu.pipeline_mode<synchronous>, transform_indices = @transform_1, window_bounds = array<i64: 32, 32>}, {pipeline_mode = #tpu.pipeline_mode<synchronous>, transform_indices = @transform_2, window_bounds = array<i64: 1, 32>}, {transform_indices = @transform_3, window_bounds = array<i64: 16, 32>}, {pipeline_mode = #tpu.pipeline_mode<synchronous>, transform_indices = @transform_4, window_bounds = array<i64: 1, 32>}, {pipeline_mode = #tpu.pipeline_mode<synchronous>, transform_indices = @transform_5, window_bounds = array<i64: 1, 32>}, {transform_indices = @transform_6, window_bounds = array<i64: 16, 32>}]} {
    %c0 = arith.constant 0 : index
    %c0_0 = arith.constant 0 : index
    %0 = vector.load %arg1[%c0, %c0_0] : memref<16x32xf32, #tpu.memory_space<vmem>>, vector<16x32xf32>
    %1 = arith.truncf %0 : vector<16x32xf32> to vector<16x32xbf16>
    %c0_1 = arith.constant 0 : index
    %c0_2 = arith.constant 0 : index
    %2 = vector.load %arg2[%c0_1, %c0_2] : memref<32x32xbf16, #tpu.memory_space<vmem>>, vector<32x32xbf16>
    %cst = arith.constant dense<0.000000e+00> : vector<16x32xf32>
    %3 = tpu.matmul %1, %2, %cst {dimension_numbers = #tpu.dot_dimension_numbers<[1], [0], [0], [1], [0, 0, 1, 1], [], []>} : vector<16x32xbf16>, vector<32x32xbf16>, vector<16x32xf32> -> vector<16x32xf32>
    %c0_3 = arith.constant 0 : index
    %c0_4 = arith.constant 0 : index
    %4 = vector.load %arg3[%c0_3, %c0_4] : memref<1x32xf32, #tpu.memory_space<vmem>>, vector<1x32xf32>
    %5 = vector.broadcast %4 : vector<1x32xf32> to vector<16x32xf32>
    %6 = arith.addf %3, %5 : vector<16x32xf32>
    %c0_5 = arith.constant 0 : index
    %c0_6 = arith.constant 0 : index
    %7 = vector.load %arg4[%c0_5, %c0_6] : memref<16x32xf32, #tpu.memory_space<vmem>>, vector<16x32xf32>
    %8 = arith.addf %7, %6 : vector<16x32xf32>
    %cst_7 = arith.constant dense<0.000000e+00> : vector<16xf32>
    %9 = vector.multi_reduction <add>, %8, %cst_7 [1] : vector<16x32xf32> to vector<16xf32>
    %10 = vector.shape_cast %9 : vector<16xf32> to vector<16x1xf32>
    %cst_8 = arith.constant 3.200000e+01 : f32
    %11 = vector.broadcast %cst_8 : f32 to vector<16x1xf32>
    %12 = arith.divf %10, %11 : vector<16x1xf32>
    %13 = vector.broadcast %12 : vector<16x1xf32> to vector<16x32xf32>
    %14 = arith.subf %8, %13 : vector<16x32xf32>
    %15 = arith.mulf %14, %14 : vector<16x32xf32>
    %cst_9 = arith.constant dense<0.000000e+00> : vector<16xf32>
    %16 = vector.multi_reduction <add>, %15, %cst_9 [1] : vector<16x32xf32> to vector<16xf32>
    %17 = vector.shape_cast %16 : vector<16xf32> to vector<16x1xf32>
    %cst_10 = arith.constant 3.200000e+01 : f32
    %18 = vector.broadcast %cst_10 : f32 to vector<16x1xf32>
    %19 = arith.divf %17, %18 : vector<16x1xf32>
    %20 = vector.broadcast %12 : vector<16x1xf32> to vector<16x32xf32>
    %21 = arith.subf %8, %20 : vector<16x32xf32>
    %cst_11 = arith.constant 9.99999974E-6 : f32
    %22 = vector.broadcast %cst_11 : f32 to vector<16x1xf32>
    %23 = arith.addf %19, %22 : vector<16x1xf32>
    %24 = math.rsqrt %23 : vector<16x1xf32>
    %25 = vector.broadcast %24 : vector<16x1xf32> to vector<16x32xf32>
    %26 = arith.mulf %21, %25 : vector<16x32xf32>
    %c0_12 = arith.constant 0 : index
    %c0_13 = arith.constant 0 : index
    %27 = vector.load %arg5[%c0_12, %c0_13] : memref<1x32xf32, #tpu.memory_space<vmem>>, vector<1x32xf32>
    %28 = vector.broadcast %27 : vector<1x32xf32> to vector<16x32xf32>
    %29 = arith.mulf %26, %28 : vector<16x32xf32>
    %c0_14 = arith.constant 0 : index
    %c0_15 = arith.constant 0 : index
    %30 = vector.load %arg6[%c0_14, %c0_15] : memref<1x32xf32, #tpu.memory_space<vmem>>, vector<1x32xf32>
    %31 = vector.broadcast %30 : vector<1x32xf32> to vector<16x32xf32>
    %32 = arith.addf %29, %31 : vector<16x32xf32>
    %c0_16 = arith.constant 0 : index
    %c0_17 = arith.constant 0 : index
    %33 = vector.load %arg7[%c0_16, %c0_17] : memref<16x32xf32, #tpu.memory_space<vmem>>, vector<16x32xf32>
    tpu.vector_store %arg7[%c0_16, %c0_17], %32 {strides = array<i32>} : memref<16x32xf32, #tpu.memory_space<vmem>>, vector<16x32xf32>,
    return
  }
  func.func @transform_0(%arg0: i32) -> (i32, i32) {
    %c0_i32 = arith.constant 0 : i32
    %c0_i32_0 = arith.constant 0 : i32
    return %arg0, %c0_i32 : i32, i32
  }
  func.func @transform_1(%arg0: i32) -> (i32, i32) {
    %c0_i32 = arith.constant 0 : i32
    %c0_i32_0 = arith.constant 0 : i32
    %c0_i32_1 = arith.constant 0 : i32
    return %c0_i32, %c0_i32_0 : i32, i32
  }
  func.func @transform_2(%arg0: i32) -> (i32, i32) {
    %c0_i32 = arith.constant 0 : i32
    %c0_i32_0 = arith.constant 0 : i32
    %c0_i32_1 = arith.constant 0 : i32
    return %c0_i32, %c0_i32_0 : i32, i32
  }
  func.func @transform_3(%arg0: i32) -> (i32, i32) {
    %c0_i32 = arith.constant 0 : i32
    %c0_i32_0 = arith.constant 0 : i32
    return %arg0, %c0_i32 : i32, i32
  }
  func.func @transform_4(%arg0: i32) -> (i32, i32) {
    %c0_i32 = arith.constant 0 : i32
    %c0_i32_0 = arith.constant 0 : i32
    %c0_i32_1 = arith.constant 0 : i32
    return %c0_i32, %c0_i32_0 : i32, i32
  }
  func.func @transform_5(%arg0: i32) -> (i32, i32) {
    %c0_i32 = arith.constant 0 : i32
    %c0_i32_0 = arith.constant 0 : i32
    %c0_i32_1 = arith.constant 0 : i32
    return %c0_i32, %c0_i32_0 : i32, i32
  }
  func.func @transform_6(%arg0: i32) -> (i32, i32) {
    %c0_i32 = arith.constant 0 : i32
    %c0_i32_0 = arith.constant 0 : i32
    return %arg0, %c0_i32 : i32, i32
  }
}

module attributes {stable_mosaic.version = 11 : i64} {
  func.func @_attn_kernel(%arg0: i32, %arg1: memref<1x8x32xf32, #tpu.memory_space<vmem>>, %arg2: memref<1x8x32xf32, #tpu.memory_space<vmem>>, %arg3: memref<1x8x32xf32, #tpu.memory_space<vmem>>, %arg4: memref<1x8x8xf32, #tpu.memory_space<vmem>>, %arg5: memref<1x8x32xf32, #tpu.memory_space<vmem>>) attributes {dimension_semantics = [#tpu.dimension_semantics<parallel>], iteration_bounds = array<i64: 2>, scalar_prefetch = 0 : i64, scratch_operands = 0 : i64, tpu.core_type = #tpu.core_type<tc>, window_params = [{transform_indices = @transform_0, window_bounds = array<i64: 1, 8, 32>}, {transform_indices = @transform_1, window_bounds = array<i64: 1, 8, 32>}, {transform_indices = @transform_2, window_bounds = array<i64: 1, 8, 32>}, {transform_indices = @transform_3, window_bounds = array<i64: 1, 8, 8>}, {transform_indices = @transform_4, window_bounds = array<i64: 1, 8, 32>}]} {
    %c0 = arith.constant 0 : index
    %c0_0 = arith.constant 0 : index
    %c0_1 = arith.constant 0 : index
    %0 = vector.load %arg1[%c0, %c0_0, %c0_1] : memref<1x8x32xf32, #tpu.memory_space<vmem>>, vector<1x8x32xf32>
    %1 = vector.shape_cast %0 : vector<1x8x32xf32> to vector<8x32xf32>
    %cst = arith.constant 0.353553385 : f32
    %2 = vector.broadcast %cst : f32 to vector<8x32xf32>
    %3 = arith.mulf %1, %2 : vector<8x32xf32>
    %4 = arith.truncf %3 : vector<8x32xf32> to vector<8x32xbf16>
    %c0_2 = arith.constant 0 : index
    %c0_3 = arith.constant 0 : index
    %c0_4 = arith.constant 0 : index
    %5 = vector.load %arg2[%c0_2, %c0_3, %c0_4] : memref<1x8x32xf32, #tpu.memory_space<vmem>>, vector<1x8x32xf32>
    %6 = vector.shape_cast %5 : vector<1x8x32xf32> to vector<8x32xf32>
    %7 = arith.truncf %6 : vector<8x32xf32> to vector<8x32xbf16>
    %c0_5 = arith.constant 0 : index
    %c0_6 = arith.constant 0 : index
    %c0_7 = arith.constant 0 : index
    %8 = vector.load %arg3[%c0_5, %c0_6, %c0_7] : memref<1x8x32xf32, #tpu.memory_space<vmem>>, vector<1x8x32xf32>
    %9 = vector.shape_cast %8 : vector<1x8x32xf32> to vector<8x32xf32>
    %10 = arith.truncf %9 : vector<8x32xf32> to vector<8x32xbf16>
    %c0_8 = arith.constant 0 : index
    %c0_9 = arith.constant 0 : index
    %c0_10 = arith.constant 0 : index
    %11 = vector.load %arg4[%c0_8, %c0_9, %c0_10] : memref<1x8x8xf32, #tpu.memory_space<vmem>>, vector<1x8x8xf32>
    %12 = vector.shape_cast %11 : vector<1x8x8xf32> to vector<8x8xf32>
    %13 = vector.extract_strided_slice %4 {offsets = [0, 0], sizes = [8, 8], strides = [1, 1]} : vector<8x32xbf16> to vector<8x8xbf16>
    %14 = vector.extract_strided_slice %7 {offsets = [0, 0], sizes = [8, 8], strides = [1, 1]} : vector<8x32xbf16> to vector<8x8xbf16>
    %15 = vector.extract_strided_slice %10 {offsets = [0, 0], sizes = [8, 8], strides = [1, 1]} : vector<8x32xbf16> to vector<8x8xbf16>
    %cst_11 = arith.constant dense<0.000000e+00> : vector<8x8xf32>
    %16 = tpu.matmul %13, %14, %cst_11 {dimension_numbers = #tpu.dot_dimension_numbers<[1], [1], [0], [0], [0, 0, 1, 0], [], []>} : vector<8x8xbf16>, vector<8x8xbf16>, vector<8x8xf32> -> vector<8x8xf32>
    %17 = arith.addf %16, %12 : vector<8x8xf32>
    %cst_12 = arith.constant dense<0xFF800000> : vector<8xf32>
    %18 = vector.multi_reduction <maximumf>, %17, %cst_12 [1] : vector<8x8xf32> to vector<8xf32>
    %19 = vector.shape_cast %18 : vector<8xf32> to vector<8x1xf32>
    %20 = vector.broadcast %19 : vector<8x1xf32> to vector<8x8xf32>
    %21 = arith.subf %17, %20 : vector<8x8xf32>
    %22 = math.exp %21 : vector<8x8xf32>
    %cst_13 = arith.constant dense<0.000000e+00> : vector<8xf32>
    %23 = vector.multi_reduction <add>, %22, %cst_13 [1] : vector<8x8xf32> to vector<8xf32>
    %24 = vector.shape_cast %23 : vector<8xf32> to vector<8x1xf32>
    %25 = tpu.reciprocal %24 {approx = true} : vector<8x1xf32> -> vector<8x1xf32>
    %26 = vector.broadcast %25 : vector<8x1xf32> to vector<8x8xf32>
    %27 = arith.mulf %22, %26 : vector<8x8xf32>
    %28 = arith.truncf %27 : vector<8x8xf32> to vector<8x8xbf16>
    %cst_14 = arith.constant dense<0.000000e+00> : vector<8x8xf32>
    %29 = tpu.matmul %28, %15, %cst_14 {dimension_numbers = #tpu.dot_dimension_numbers<[1], [0], [0], [1], [0, 0, 1, 1], [], []>} : vector<8x8xbf16>, vector<8x8xbf16>, vector<8x8xf32> -> vector<8x8xf32>
    %30 = vector.extract_strided_slice %4 {offsets = [0, 8], sizes = [8, 8], strides = [1, 1]} : vector<8x32xbf16> to vector<8x8xbf16>
    %31 = vector.extract_strided_slice %7 {offsets = [0, 8], sizes = [8, 8], strides = [1, 1]} : vector<8x32xbf16> to vector<8x8xbf16>
    %32 = vector.extract_strided_slice %10 {offsets = [0, 8], sizes = [8, 8], strides = [1, 1]} : vector<8x32xbf16> to vector<8x8xbf16>
    %cst_15 = arith.constant dense<0.000000e+00> : vector<8x8xf32>
    %33 = tpu.matmul %30, %31, %cst_15 {dimension_numbers = #tpu.dot_dimension_numbers<[1], [1], [0], [0], [0, 0, 1, 0], [], []>} : vector<8x8xbf16>, vector<8x8xbf16>, vector<8x8xf32> -> vector<8x8xf32>
    %34 = arith.addf %33, %12 : vector<8x8xf32>
    %cst_16 = arith.constant dense<0xFF800000> : vector<8xf32>
    %35 = vector.multi_reduction <maximumf>, %34, %cst_16 [1] : vector<8x8xf32> to vector<8xf32>
    %36 = vector.shape_cast %35 : vector<8xf32> to vector<8x1xf32>
    %37 = vector.broadcast %36 : vector<8x1xf32> to vector<8x8xf32>
    %38 = arith.subf %34, %37 : vector<8x8xf32>
    %39 = math.exp %38 : vector<8x8xf32>
    %cst_17 = arith.constant dense<0.000000e+00> : vector<8xf32>
    %40 = vector.multi_reduction <add>, %39, %cst_17 [1] : vector<8x8xf32> to vector<8xf32>
    %41 = vector.shape_cast %40 : vector<8xf32> to vector<8x1xf32>
    %42 = tpu.reciprocal %41 {approx = true} : vector<8x1xf32> -> vector<8x1xf32>
    %43 = vector.broadcast %42 : vector<8x1xf32> to vector<8x8xf32>
    %44 = arith.mulf %39, %43 : vector<8x8xf32>
    %45 = arith.truncf %44 : vector<8x8xf32> to vector<8x8xbf16>
    %cst_18 = arith.constant dense<0.000000e+00> : vector<8x8xf32>
    %46 = tpu.matmul %45, %32, %cst_18 {dimension_numbers = #tpu.dot_dimension_numbers<[1], [0], [0], [1], [0, 0, 1, 1], [], []>} : vector<8x8xbf16>, vector<8x8xbf16>, vector<8x8xf32> -> vector<8x8xf32>
    %47 = vector.extract_strided_slice %4 {offsets = [0, 16], sizes = [8, 8], strides = [1, 1]} : vector<8x32xbf16> to vector<8x8xbf16>
    %48 = vector.extract_strided_slice %7 {offsets = [0, 16], sizes = [8, 8], strides = [1, 1]} : vector<8x32xbf16> to vector<8x8xbf16>
    %49 = vector.extract_strided_slice %10 {offsets = [0, 16], sizes = [8, 8], strides = [1, 1]} : vector<8x32xbf16> to vector<8x8xbf16>
    %cst_19 = arith.constant dense<0.000000e+00> : vector<8x8xf32>
    %50 = tpu.matmul %47, %48, %cst_19 {dimension_numbers = #tpu.dot_dimension_numbers<[1], [1], [0], [0], [0, 0, 1, 0], [], []>} : vector<8x8xbf16>, vector<8x8xbf16>, vector<8x8xf32> -> vector<8x8xf32>
    %51 = arith.addf %50, %12 : vector<8x8xf32>
    %cst_20 = arith.constant dense<0xFF800000> : vector<8xf32>
    %52 = vector.multi_reduction <maximumf>, %51, %cst_20 [1] : vector<8x8xf32> to vector<8xf32>
    %53 = vector.shape_cast %52 : vector<8xf32> to vector<8x1xf32>
    %54 = vector.broadcast %53 : vector<8x1xf32> to vector<8x8xf32>
    %55 = arith.subf %51, %54 : vector<8x8xf32>
    %56 = math.exp %55 : vector<8x8xf32>
    %cst_21 = arith.constant dense<0.000000e+00> : vector<8xf32>
    %57 = vector.multi_reduction <add>, %56, %cst_21 [1] : vector<8x8xf32> to vector<8xf32>
    %58 = vector.shape_cast %57 : vector<8xf32> to vector<8x1xf32>
    %59 = tpu.reciprocal %58 {approx = true} : vector<8x1xf32> -> vector<8x1xf32>
    %60 = vector.broadcast %59 : vector<8x1xf32> to vector<8x8xf32>
    %61 = arith.mulf %56, %60 : vector<8x8xf32>
    %62 = arith.truncf %61 : vector<8x8xf32> to vector<8x8xbf16>
    %cst_22 = arith.constant dense<0.000000e+00> : vector<8x8xf32>
    %63 = tpu.matmul %62, %49, %cst_22 {dimension_numbers = #tpu.dot_dimension_numbers<[1], [0], [0], [1], [0, 0, 1, 1], [], []>} : vector<8x8xbf16>, vector<8x8xbf16>, vector<8x8xf32> -> vector<8x8xf32>
    %64 = vector.extract_strided_slice %4 {offsets = [0, 24], sizes = [8, 8], strides = [1, 1]} : vector<8x32xbf16> to vector<8x8xbf16>
    %65 = vector.extract_strided_slice %7 {offsets = [0, 24], sizes = [8, 8], strides = [1, 1]} : vector<8x32xbf16> to vector<8x8xbf16>
    %66 = vector.extract_strided_slice %10 {offsets = [0, 24], sizes = [8, 8], strides = [1, 1]} : vector<8x32xbf16> to vector<8x8xbf16>
    %cst_23 = arith.constant dense<0.000000e+00> : vector<8x8xf32>
    %67 = tpu.matmul %64, %65, %cst_23 {dimension_numbers = #tpu.dot_dimension_numbers<[1], [1], [0], [0], [0, 0, 1, 0], [], []>} : vector<8x8xbf16>, vector<8x8xbf16>, vector<8x8xf32> -> vector<8x8xf32>
    %68 = arith.addf %67, %12 : vector<8x8xf32>
    %cst_24 = arith.constant dense<0xFF800000> : vector<8xf32>
    %69 = vector.multi_reduction <maximumf>, %68, %cst_24 [1] : vector<8x8xf32> to vector<8xf32>
    %70 = vector.shape_cast %69 : vector<8xf32> to vector<8x1xf32>
    %71 = vector.broadcast %70 : vector<8x1xf32> to vector<8x8xf32>
    %72 = arith.subf %68, %71 : vector<8x8xf32>
    %73 = math.exp %72 : vector<8x8xf32>
    %cst_25 = arith.constant dense<0.000000e+00> : vector<8xf32>
    %74 = vector.multi_reduction <add>, %73, %cst_25 [1] : vector<8x8xf32> to vector<8xf32>
    %75 = vector.shape_cast %74 : vector<8xf32> to vector<8x1xf32>
    %76 = tpu.reciprocal %75 {approx = true} : vector<8x1xf32> -> vector<8x1xf32>
    %77 = vector.broadcast %76 : vector<8x1xf32> to vector<8x8xf32>
    %78 = arith.mulf %73, %77 : vector<8x8xf32>
    %79 = arith.truncf %78 : vector<8x8xf32> to vector<8x8xbf16>
    %cst_26 = arith.constant dense<0.000000e+00> : vector<8x8xf32>
    %80 = tpu.matmul %79, %66, %cst_26 {dimension_numbers = #tpu.dot_dimension_numbers<[1], [0], [0], [1], [0, 0, 1, 1], [], []>} : vector<8x8xbf16>, vector<8x8xbf16>, vector<8x8xf32> -> vector<8x8xf32>
    %81 = tpu.concatenate %29, %46, %63, %80 in 1 : vector<8x8xf32>, vector<8x8xf32>, vector<8x8xf32>, vector<8x8xf32> -> vector<8x32xf32>
    %c0_27 = arith.constant 0 : index
    %c0_28 = arith.constant 0 : index
    %c0_29 = arith.constant 0 : index
    %82 = vector.load %arg5[%c0_27, %c0_28, %c0_29] : memref<1x8x32xf32, #tpu.memory_space<vmem>>, vector<1x8x32xf32>
    %83 = vector.shape_cast %82 : vector<1x8x32xf32> to vector<8x32xf32>
    %84 = vector.shape_cast %81 : vector<8x32xf32> to vector<1x8x32xf32>
    tpu.vector_store %arg5[%c0_27, %c0_28, %c0_29], %84 {strides = array<i32>} : memref<1x8x32xf32, #tpu.memory_space<vmem>>, vector<1x8x32xf32>,
    return
  }
  func.func @transform_0(%arg0: i32) -> (i32, i32, i32) {
    %c0_i32 = arith.constant 0 : i32
    %c0_i32_0 = arith.constant 0 : i32
    %c0_i32_1 = arith.constant 0 : i32
    return %arg0, %c0_i32, %c0_i32_0 : i32, i32, i32
  }
  func.func @transform_1(%arg0: i32) -> (i32, i32, i32) {
    %c0_i32 = arith.constant 0 : i32
    %c0_i32_0 = arith.constant 0 : i32
    %c0_i32_1 = arith.constant 0 : i32
    return %arg0, %c0_i32, %c0_i32_0 : i32, i32, i32
  }
  func.func @transform_2(%arg0: i32) -> (i32, i32, i32) {
    %c0_i32 = arith.constant 0 : i32
    %c0_i32_0 = arith.constant 0 : i32
    %c0_i32_1 = arith.constant 0 : i32
    return %arg0, %c0_i32, %c0_i32_0 : i32, i32, i32
  }
  func.func @transform_3(%arg0: i32) -> (i32, i32, i32) {
    %c0_i32 = arith.constant 0 : i32
    %c0_i32_0 = arith.constant 0 : i32
    %c0_i32_1 = arith.constant 0 : i32
    return %arg0, %c0_i32, %c0_i32_0 : i32, i32, i32
  }
  func.func @transform_4(%arg0: i32) -> (i32, i32, i32) {
    %c0_i32 = arith.constant 0 : i32
    %c0_i32_0 = arith.constant 0 : i32
    %c0_i32_1 = arith.constant 0 : i32
    return %arg0, %c0_i32, %c0_i32_0 : i32, i32, i32
  }
}

module attributes {stable_mosaic.version = 11 : i64} {
  func.func @_matmul_kernel(%arg0: i32, %arg1: i32, %arg2: i32, %arg3: memref<16x32xf32, #tpu.memory_space<vmem>>, %arg4: memref<32x32xbf16, #tpu.memory_space<vmem>>, %arg5: memref<1x32xf32, #tpu.memory_space<vmem>>, %arg6: memref<16x32xf32, #tpu.memory_space<vmem>>, %arg7: memref<16x32xf32, #tpu.memory_space<vmem>>) attributes {dimension_semantics = [#tpu.dimension_semantics<parallel>, #tpu.dimension_semantics<parallel>, #tpu.dimension_semantics<arbitrary>], iteration_bounds = array<i64: 1, 1, 1>, scalar_prefetch = 0 : i64, scratch_operands = 1 : i64, tpu.core_type = #tpu.core_type<tc>, window_params = [{transform_indices = @transform_0, window_bounds = array<i64: 16, 32>}, {transform_indices = @transform_1, window_bounds = array<i64: 32, 32>}, {transform_indices = @transform_2, window_bounds = array<i64: 1, 32>}, {transform_indices = @transform_3, window_bounds = array<i64: 16, 32>}]} {
    %c0_i32 = arith.constant 0 : i32
    %0 = arith.cmpi eq, %arg2, %c0_i32 : i32
    %1 = arith.extui %0 : i1 to i32
    %c0_i32_0 = arith.constant 0 : i32
    %2 = arith.cmpi ne, %1, %c0_i32_0 : i32
    scf.if %2 {
      %cst_10 = arith.constant 0.000000e+00 : f32
      %13 = vector.broadcast %cst_10 : f32 to vector<16x32xf32>
      %c0_11 = arith.constant 0 : index
      %c0_12 = arith.constant 0 : index
      %14 = vector.load %arg7[%c0_11, %c0_12] : memref<16x32xf32, #tpu.memory_space<vmem>>, vector<16x32xf32>
      tpu.vector_store %arg7[%c0_11, %c0_12], %13 {strides = array<i32>} : memref<16x32xf32, #tpu.memory_space<vmem>>, vector<16x32xf32>,
    } else {
    }
    %c0 = arith.constant 0 : index
    %c0_1 = arith.constant 0 : index
    %3 = vector.load %arg7[%c0, %c0_1] : memref<16x32xf32, #tpu.memory_space<vmem>>, vector<16x32xf32>
    %c0_2 = arith.constant 0 : index
    %c0_3 = arith.constant 0 : index
    %4 = vector.load %arg3[%c0_2, %c0_3] : memref<16x32xf32, #tpu.memory_space<vmem>>, vector<16x32xf32>
    %5 = arith.truncf %4 : vector<16x32xf32> to vector<16x32xbf16>
    %c0_4 = arith.constant 0 : index
    %c0_5 = arith.constant 0 : index
    %6 = vector.load %arg4[%c0_4, %c0_5] : memref<32x32xbf16, #tpu.memory_space<vmem>>, vector<32x32xbf16>
    %cst = arith.constant dense<0.000000e+00> : vector<16x32xf32>
    %7 = tpu.matmul %5, %6, %cst {dimension_numbers = #tpu.dot_dimension_numbers<[1], [0], [0], [1], [0, 0, 1, 1], [], []>} : vector<16x32xbf16>, vector<32x32xbf16>, vector<16x32xf32> -> vector<16x32xf32>
    %8 = arith.addf %3, %7 : vector<16x32xf32>
    %c0_6 = arith.constant 0 : index
    %c0_7 = arith.constant 0 : index
    %9 = vector.load %arg7[%c0_6, %c0_7] : memref<16x32xf32, #tpu.memory_space<vmem>>, vector<16x32xf32>
    tpu.vector_store %arg7[%c0_6, %c0_7], %8 {strides = array<i32>} : memref<16x32xf32, #tpu.memory_space<vmem>>, vector<16x32xf32>,
    %c0_i32_8 = arith.constant 0 : i32
    %10 = arith.cmpi eq, %arg2, %c0_i32_8 : i32
    %11 = arith.extui %10 : i1 to i32
    %c0_i32_9 = arith.constant 0 : i32
    %12 = arith.cmpi ne, %11, %c0_i32_9 : i32
    scf.if %12 {
      %c0_10 = arith.constant 0 : index
      %c0_11 = arith.constant 0 : index
      %13 = vector.load %arg7[%c0_10, %c0_11] : memref<16x32xf32, #tpu.memory_space<vmem>>, vector<16x32xf32>
      %c0_12 = arith.constant 0 : index
      %c0_13 = arith.constant 0 : index
      %14 = vector.load %arg5[%c0_12, %c0_13] : memref<1x32xf32, #tpu.memory_space<vmem>>, vector<1x32xf32>
      %15 = vector.broadcast %14 : vector<1x32xf32> to vector<16x32xf32>
      %16 = arith.addf %13, %15 : vector<16x32xf32>
      %c0_14 = arith.constant 0 : index
      %c0_15 = arith.constant 0 : index
      %17 = vector.load %arg6[%c0_14, %c0_15] : memref<16x32xf32, #tpu.memory_space<vmem>>, vector<16x32xf32>
      tpu.vector_store %arg6[%c0_14, %c0_15], %16 {strides = array<i32>} : memref<16x32xf32, #tpu.memory_space<vmem>>, vector<16x32xf32>,
    } else {
    }
    return
  }
  func.func @transform_0(%arg0: i32, %arg1: i32, %arg2: i32) -> (i32, i32) {
    %c0_i32 = arith.constant 0 : i32
    return %arg0, %arg2 : i32, i32
  }
  func.func @transform_1(%arg0: i32, %arg1: i32, %arg2: i32) -> (i32, i32) {
    %c0_i32 = arith.constant 0 : i32
    return %arg2, %arg1 : i32, i32
  }
  func.func @transform_2(%arg0: i32, %arg1: i32, %arg2: i32) -> (i32, i32) {
    %c0_i32 = arith.constant 0 : i32
    %c0_i32_0 = arith.constant 0 : i32
    return %c0_i32, %arg1 : i32, i32
  }
  func.func @transform_3(%arg0: i32, %arg1: i32, %arg2: i32) -> (i32, i32) {
    %c0_i32 = arith.constant 0 : i32
    return %arg0, %arg1 : i32, i32
  }
}

module attributes {stable_mosaic.version = 11 : i64} {
  func.func @_matmul_kernel(%arg0: i32, %arg1: i32, %arg2: i32, %arg3: memref<16x32xf32, #tpu.memory_space<vmem>>, %arg4: memref<32x64xbf16, #tpu.memory_space<vmem>>, %arg5: memref<1x64xf32, #tpu.memory_space<vmem>>, %arg6: memref<16x64xf32, #tpu.memory_space<vmem>>, %arg7: memref<16x64xf32, #tpu.memory_space<vmem>>) attributes {dimension_semantics = [#tpu.dimension_semantics<parallel>, #tpu.dimension_semantics<parallel>, #tpu.dimension_semantics<arbitrary>], iteration_bounds = array<i64: 1, 1, 1>, scalar_prefetch = 0 : i64, scratch_operands = 1 : i64, tpu.core_type = #tpu.core_type<tc>, window_params = [{transform_indices = @transform_0, window_bounds = array<i64: 16, 32>}, {transform_indices = @transform_1, window_bounds = array<i64: 32, 64>}, {transform_indices = @transform_2, window_bounds = array<i64: 1, 64>}, {transform_indices = @transform_3, window_bounds = array<i64: 16, 64>}]} {
    %c0_i32 = arith.constant 0 : i32
    %0 = arith.cmpi eq, %arg2, %c0_i32 : i32
    %1 = arith.extui %0 : i1 to i32
    %c0_i32_0 = arith.constant 0 : i32
    %2 = arith.cmpi ne, %1, %c0_i32_0 : i32
    scf.if %2 {
      %cst_10 = arith.constant 0.000000e+00 : f32
      %13 = vector.broadcast %cst_10 : f32 to vector<16x64xf32>
      %c0_11 = arith.constant 0 : index
      %c0_12 = arith.constant 0 : index
      %14 = vector.load %arg7[%c0_11, %c0_12] : memref<16x64xf32, #tpu.memory_space<vmem>>, vector<16x64xf32>
      tpu.vector_store %arg7[%c0_11, %c0_12], %13 {strides = array<i32>} : memref<16x64xf32, #tpu.memory_space<vmem>>, vector<16x64xf32>,
    } else {
    }
    %c0 = arith.constant 0 : index
    %c0_1 = arith.constant 0 : index
    %3 = vector.load %arg7[%c0, %c0_1] : memref<16x64xf32, #tpu.memory_space<vmem>>, vector<16x64xf32>
    %c0_2 = arith.constant 0 : index
    %c0_3 = arith.constant 0 : index
    %4 = vector.load %arg3[%c0_2, %c0_3] : memref<16x32xf32, #tpu.memory_space<vmem>>, vector<16x32xf32>
    %5 = arith.truncf %4 : vector<16x32xf32> to vector<16x32xbf16>
    %c0_4 = arith.constant 0 : index
    %c0_5 = arith.constant 0 : index
    %6 = vector.load %arg4[%c0_4, %c0_5] : memref<32x64xbf16, #tpu.memory_space<vmem>>, vector<32x64xbf16>
    %cst = arith.constant dense<0.000000e+00> : vector<16x64xf32>
    %7 = tpu.matmul %5, %6, %cst {dimension_numbers = #tpu.dot_dimension_numbers<[1], [0], [0], [1], [0, 0, 1, 1], [], []>} : vector<16x32xbf16>, vector<32x64xbf16>, vector<16x64xf32> -> vector<16x64xf32>
    %8 = arith.addf %3, %7 : vector<16x64xf32>
    %c0_6 = arith.constant 0 : index
    %c0_7 = arith.constant 0 : index
    %9 = vector.load %arg7[%c0_6, %c0_7] : memref<16x64xf32, #tpu.memory_space<vmem>>, vector<16x64xf32>
    tpu.vector_store %arg7[%c0_6, %c0_7], %8 {strides = array<i32>} : memref<16x64xf32, #tpu.memory_space<vmem>>, vector<16x64xf32>,
    %c0_i32_8 = arith.constant 0 : i32
    %10 = arith.cmpi eq, %arg2, %c0_i32_8 : i32
    %11 = arith.extui %10 : i1 to i32
    %c0_i32_9 = arith.constant 0 : i32
    %12 = arith.cmpi ne, %11, %c0_i32_9 : i32
    scf.if %12 {
      %c0_10 = arith.constant 0 : index
      %c0_11 = arith.constant 0 : index
      %13 = vector.load %arg7[%c0_10, %c0_11] : memref<16x64xf32, #tpu.memory_space<vmem>>, vector<16x64xf32>
      %c0_12 = arith.constant 0 : index
      %c0_13 = arith.constant 0 : index
      %14 = vector.load %arg5[%c0_12, %c0_13] : memref<1x64xf32, #tpu.memory_space<vmem>>, vector<1x64xf32>
      %15 = vector.broadcast %14 : vector<1x64xf32> to vector<16x64xf32>
      %16 = arith.addf %13, %15 : vector<16x64xf32>
      %c0_14 = arith.constant 0 : index
      %c0_15 = arith.constant 0 : index
      %17 = vector.load %arg6[%c0_14, %c0_15] : memref<16x64xf32, #tpu.memory_space<vmem>>, vector<16x64xf32>
      tpu.vector_store %arg6[%c0_14, %c0_15], %16 {strides = array<i32>} : memref<16x64xf32, #tpu.memory_space<vmem>>, vector<16x64xf32>,
    } else {
    }
    return
  }
  func.func @transform_0(%arg0: i32, %arg1: i32, %arg2: i32) -> (i32, i32) {
    %c0_i32 = arith.constant 0 : i32
    return %arg0, %arg2 : i32, i32
  }
  func.func @transform_1(%arg0: i32, %arg1: i32, %arg2: i32) -> (i32, i32) {
    %c0_i32 = arith.constant 0 : i32
    return %arg2, %arg1 : i32, i32
  }
  func.func @transform_2(%arg0: i32, %arg1: i32, %arg2: i32) -> (i32, i32) {
    %c0_i32 = arith.constant 0 : i32
    %c0_i32_0 = arith.constant 0 : i32
    return %c0_i32, %arg1 : i32, i32
  }
  func.func @transform_3(%arg0: i32, %arg1: i32, %arg2: i32) -> (i32, i32) {
    %c0_i32 = arith.constant 0 : i32
    return %arg0, %arg1 : i32, i32
  }
}

module attributes {stable_mosaic.version = 11 : i64} {
  func.func @_ffn_res_ln_kernel(%arg0: i32, %arg1: memref<16x32xf32, #tpu.memory_space<vmem>>, %arg2: memref<32x64xbf16, #tpu.memory_space<vmem>>, %arg3: memref<1x64xf32, #tpu.memory_space<vmem>>, %arg4: memref<64x32xbf16, #tpu.memory_space<vmem>>, %arg5: memref<1x32xf32, #tpu.memory_space<vmem>>, %arg6: memref<1x32xf32, #tpu.memory_space<vmem>>, %arg7: memref<1x32xf32, #tpu.memory_space<vmem>>, %arg8: memref<16x32xf32, #tpu.memory_space<vmem>>) attributes {dimension_semantics = [#tpu.dimension_semantics<parallel>], iteration_bounds = array<i64: 1>, scalar_prefetch = 0 : i64, scratch_operands = 0 : i64, tpu.core_type = #tpu.core_type<tc>, window_params = [{transform_indices = @transform_0, window_bounds = array<i64: 16, 32>}, {pipeline_mode = #tpu.pipeline_mode<synchronous>, transform_indices = @transform_1, window_bounds = array<i64: 32, 64>}, {pipeline_mode = #tpu.pipeline_mode<synchronous>, transform_indices = @transform_2, window_bounds = array<i64: 1, 64>}, {pipeline_mode = #tpu.pipeline_mode<synchronous>, transform_indices = @transform_3, window_bounds = array<i64: 64, 32>}, {pipeline_mode = #tpu.pipeline_mode<synchronous>, transform_indices = @transform_4, window_bounds = array<i64: 1, 32>}, {pipeline_mode = #tpu.pipeline_mode<synchronous>, transform_indices = @transform_5, window_bounds = array<i64: 1, 32>}, {pipeline_mode = #tpu.pipeline_mode<synchronous>, transform_indices = @transform_6, window_bounds = array<i64: 1, 32>}, {transform_indices = @transform_7, window_bounds = array<i64: 16, 32>}]} {
    %c0 = arith.constant 0 : index
    %c0_0 = arith.constant 0 : index
    %0 = vector.load %arg1[%c0, %c0_0] : memref<16x32xf32, #tpu.memory_space<vmem>>, vector<16x32xf32>
    %1 = arith.truncf %0 : vector<16x32xf32> to vector<16x32xbf16>
    %c0_1 = arith.constant 0 : index
    %c0_2 = arith.constant 0 : index
    %2 = vector.load %arg2[%c0_1, %c0_2] : memref<32x64xbf16, #tpu.memory_space<vmem>>, vector<32x64xbf16>
    %cst = arith.constant dense<0.000000e+00> : vector<16x64xf32>
    %3 = tpu.matmul %1, %2, %cst {dimension_numbers = #tpu.dot_dimension_numbers<[1], [0], [0], [1], [0, 0, 1, 1], [], []>} : vector<16x32xbf16>, vector<32x64xbf16>, vector<16x64xf32> -> vector<16x64xf32>
    %c0_3 = arith.constant 0 : index
    %c0_4 = arith.constant 0 : index
    %4 = vector.load %arg3[%c0_3, %c0_4] : memref<1x64xf32, #tpu.memory_space<vmem>>, vector<1x64xf32>
    %5 = vector.broadcast %4 : vector<1x64xf32> to vector<16x64xf32>
    %6 = arith.addf %3, %5 : vector<16x64xf32>
    %cst_5 = arith.constant 0.000000e+00 : f32
    %7 = vector.broadcast %cst_5 : f32 to vector<16x64xf32>
    %8 = arith.maximumf %6, %7 : vector<16x64xf32>
    %9 = arith.truncf %8 : vector<16x64xf32> to vector<16x64xbf16>
    %c0_6 = arith.constant 0 : index
    %c0_7 = arith.constant 0 : index
    %10 = vector.load %arg4[%c0_6, %c0_7] : memref<64x32xbf16, #tpu.memory_space<vmem>>, vector<64x32xbf16>
    %cst_8 = arith.constant dense<0.000000e+00> : vector<16x32xf32>
    %11 = tpu.matmul %9, %10, %cst_8 {dimension_numbers = #tpu.dot_dimension_numbers<[1], [0], [0], [1], [0, 0, 1, 1], [], []>} : vector<16x64xbf16>, vector<64x32xbf16>, vector<16x32xf32> -> vector<16x32xf32>
    %c0_9 = arith.constant 0 : index
    %c0_10 = arith.constant 0 : index
    %12 = vector.load %arg5[%c0_9, %c0_10] : memref<1x32xf32, #tpu.memory_space<vmem>>, vector<1x32xf32>
    %13 = vector.broadcast %12 : vector<1x32xf32> to vector<16x32xf32>
    %14 = arith.addf %11, %13 : vector<16x32xf32>
    %15 = arith.addf %0, %14 : vector<16x32xf32>
    %cst_11 = arith.constant dense<0.000000e+00> : vector<16xf32>
    %16 = vector.multi_reduction <add>, %15, %cst_11 [1] : vector<16x32xf32> to vector<16xf32>
    %17 = vector.shape_cast %16 : vector<16xf32> to vector<16x1xf32>
    %cst_12 = arith.constant 3.200000e+01 : f32
    %18 = vector.broadcast %cst_12 : f32 to vector<16x1xf32>
    %19 = arith.divf %17, %18 : vector<16x1xf32>
    %20 = vector.broadcast %19 : vector<16x1xf32> to vector<16x32xf32>
    %21 = arith.subf %15, %20 : vector<16x32xf32>
    %22 = arith.mulf %21, %21 : vector<16x32xf32>
    %cst_13 = arith.constant dense<0.000000e+00> : vector<16xf32>
    %23 = vector.multi_reduction <add>, %22, %cst_13 [1] : vector<16x32xf32> to vector<16xf32>
    %24 = vector.shape_cast %23 : vector<16xf32> to vector<16x1xf32>
    %cst_14 = arith.constant 3.200000e+01 : f32
    %25 = vector.broadcast %cst_14 : f32 to vector<16x1xf32>
    %26 = arith.divf %24, %25 : vector<16x1xf32>
    %27 = vector.broadcast %19 : vector<16x1xf32> to vector<16x32xf32>
    %28 = arith.subf %15, %27 : vector<16x32xf32>
    %cst_15 = arith.constant 9.99999974E-6 : f32
    %29 = vector.broadcast %cst_15 : f32 to vector<16x1xf32>
    %30 = arith.addf %26, %29 : vector<16x1xf32>
    %31 = math.rsqrt %30 : vector<16x1xf32>
    %32 = vector.broadcast %31 : vector<16x1xf32> to vector<16x32xf32>
    %33 = arith.mulf %28, %32 : vector<16x32xf32>
    %c0_16 = arith.constant 0 : index
    %c0_17 = arith.constant 0 : index
    %34 = vector.load %arg6[%c0_16, %c0_17] : memref<1x32xf32, #tpu.memory_space<vmem>>, vector<1x32xf32>
    %35 = vector.broadcast %34 : vector<1x32xf32> to vector<16x32xf32>
    %36 = arith.mulf %33, %35 : vector<16x32xf32>
    %c0_18 = arith.constant 0 : index
    %c0_19 = arith.constant 0 : index
    %37 = vector.load %arg7[%c0_18, %c0_19] : memref<1x32xf32, #tpu.memory_space<vmem>>, vector<1x32xf32>
    %38 = vector.broadcast %37 : vector<1x32xf32> to vector<16x32xf32>
    %39 = arith.addf %36, %38 : vector<16x32xf32>
    %c0_20 = arith.constant 0 : index
    %c0_21 = arith.constant 0 : index
    %40 = vector.load %arg8[%c0_20, %c0_21] : memref<16x32xf32, #tpu.memory_space<vmem>>, vector<16x32xf32>
    tpu.vector_store %arg8[%c0_20, %c0_21], %39 {strides = array<i32>} : memref<16x32xf32, #tpu.memory_space<vmem>>, vector<16x32xf32>,
    return
  }
  func.func @transform_0(%arg0: i32) -> (i32, i32) {
    %c0_i32 = arith.constant 0 : i32
    %c0_i32_0 = arith.constant 0 : i32
    return %arg0, %c0_i32 : i32, i32
  }
  func.func @transform_1(%arg0: i32) -> (i32, i32) {
    %c0_i32 = arith.constant 0 : i32
    %c0_i32_0 = arith.constant 0 : i32
    %c0_i32_1 = arith.constant 0 : i32
    return %c0_i32, %c0_i32_0 : i32, i32
  }
  func.func @transform_2(%arg0: i32) -> (i32, i32) {
    %c0_i32 = arith.constant 0 : i32
    %c0_i32_0 = arith.constant 0 : i32
    %c0_i32_1 = arith.constant 0 : i32
    return %c0_i32, %c0_i32_0 : i32, i32
  }
  func.func @transform_3(%arg0: i32) -> (i32, i32) {
    %c0_i32 = arith.constant 0 : i32
    %c0_i32_0 = arith.constant 0 : i32
    %c0_i32_1 = arith.constant 0 : i32
    return %c0_i32, %c0_i32_0 : i32, i32
  }
  func.func @transform_4(%arg0: i32) -> (i32, i32) {
    %c0_i32 = arith.constant 0 : i32
    %c0_i32_0 = arith.constant 0 : i32
    %c0_i32_1 = arith.constant 0 : i32
    return %c0_i32, %c0_i32_0 : i32, i32
  }
  func.func @transform_5(%arg0: i32) -> (i32, i32) {
    %c0_i32 = arith.constant 0 : i32
    %c0_i32_0 = arith.constant 0 : i32
    %c0_i32_1 = arith.constant 0 : i32
    return %c0_i32, %c0_i32_0 : i32, i32
  }
  func.func @transform_6(%arg0: i32) -> (i32, i32) {
    %c0_i32 = arith.constant 0 : i32
    %c0_i32_0 = arith.constant 0 : i32
    %c0_i32_1 = arith.constant 0 : i32
    return %c0_i32, %c0_i32_0 : i32, i32
  }
  func.func @transform_7(%arg0: i32) -> (i32, i32) {
    %c0_i32 = arith.constant 0 : i32
    %c0_i32_0 = arith.constant 0 : i32
    return %arg0, %c0_i32 : i32, i32
  }
}

module attributes {stable_mosaic.version = 11 : i64} {
  func.func @_ffn_res_ln_kernel(%arg0: i32, %arg1: memref<16x32xf32, #tpu.memory_space<vmem>>, %arg2: memref<32x64xbf16, #tpu.memory_space<vmem>>, %arg3: memref<1x64xf32, #tpu.memory_space<vmem>>, %arg4: memref<64x32xbf16, #tpu.memory_space<vmem>>, %arg5: memref<1x32xf32, #tpu.memory_space<vmem>>, %arg6: memref<1x32xf32, #tpu.memory_space<vmem>>, %arg7: memref<1x32xf32, #tpu.memory_space<vmem>>, %arg8: memref<16x32xf32, #tpu.memory_space<vmem>>) attributes {dimension_semantics = [#tpu.dimension_semantics<parallel>], iteration_bounds = array<i64: 1>, scalar_prefetch = 0 : i64, scratch_operands = 0 : i64, tpu.core_type = #tpu.core_type<tc>, window_params = [{transform_indices = @transform_0, window_bounds = array<i64: 16, 32>}, {pipeline_mode = #tpu.pipeline_mode<synchronous>, transform_indices = @transform_1, window_bounds = array<i64: 32, 64>}, {pipeline_mode = #tpu.pipeline_mode<synchronous>, transform_indices = @transform_2, window_bounds = array<i64: 1, 64>}, {pipeline_mode = #tpu.pipeline_mode<synchronous>, transform_indices = @transform_3, window_bounds = array<i64: 64, 32>}, {pipeline_mode = #tpu.pipeline_mode<synchronous>, transform_indices = @transform_4, window_bounds = array<i64: 1, 32>}, {pipeline_mode = #tpu.pipeline_mode<synchronous>, transform_indices = @transform_5, window_bounds = array<i64: 1, 32>}, {pipeline_mode = #tpu.pipeline_mode<synchronous>, transform_indices = @transform_6, window_bounds = array<i64: 1, 32>}, {transform_indices = @transform_7, window_bounds = array<i64: 16, 32>}]} {
    %c0 = arith.constant 0 : index
    %c0_0 = arith.constant 0 : index
    %0 = vector.load %arg1[%c0, %c0_0] : memref<16x32xf32, #tpu.memory_space<vmem>>, vector<16x32xf32>
    %1 = arith.truncf %0 : vector<16x32xf32> to vector<16x32xbf16>
    %c0_1 = arith.constant 0 : index
    %c0_2 = arith.constant 0 : index
    %2 = vector.load %arg2[%c0_1, %c0_2] : memref<32x64xbf16, #tpu.memory_space<vmem>>, vector<32x64xbf16>
    %cst = arith.constant dense<0.000000e+00> : vector<16x64xf32>
    %3 = tpu.matmul %1, %2, %cst {dimension_numbers = #tpu.dot_dimension_numbers<[1], [0], [0], [1], [0, 0, 1, 1], [], []>} : vector<16x32xbf16>, vector<32x64xbf16>, vector<16x64xf32> -> vector<16x64xf32>
    %c0_3 = arith.constant 0 : index
    %c0_4 = arith.constant 0 : index
    %4 = vector.load %arg3[%c0_3, %c0_4] : memref<1x64xf32, #tpu.memory_space<vmem>>, vector<1x64xf32>
    %5 = vector.broadcast %4 : vector<1x64xf32> to vector<16x64xf32>
    %6 = arith.addf %3, %5 : vector<16x64xf32>
    %cst_5 = arith.constant 0.000000e+00 : f32
    %7 = vector.broadcast %cst_5 : f32 to vector<16x64xf32>
    %8 = arith.maximumf %6, %7 : vector<16x64xf32>
    %9 = arith.truncf %8 : vector<16x64xf32> to vector<16x64xbf16>
    %c0_6 = arith.constant 0 : index
    %c0_7 = arith.constant 0 : index
    %10 = vector.load %arg4[%c0_6, %c0_7] : memref<64x32xbf16, #tpu.memory_space<vmem>>, vector<64x32xbf16>
    %cst_8 = arith.constant dense<0.000000e+00> : vector<16x32xf32>
    %11 = tpu.matmul %9, %10, %cst_8 {dimension_numbers = #tpu.dot_dimension_numbers<[1], [0], [0], [1], [0, 0, 1, 1], [], []>} : vector<16x64xbf16>, vector<64x32xbf16>, vector<16x32xf32> -> vector<16x32xf32>
    %c0_9 = arith.constant 0 : index
    %c0_10 = arith.constant 0 : index
    %12 = vector.load %arg5[%c0_9, %c0_10] : memref<1x32xf32, #tpu.memory_space<vmem>>, vector<1x32xf32>
    %13 = vector.broadcast %12 : vector<1x32xf32> to vector<16x32xf32>
    %14 = arith.addf %11, %13 : vector<16x32xf32>
    %15 = arith.addf %0, %14 : vector<16x32xf32>
    %cst_11 = arith.constant dense<0.000000e+00> : vector<16xf32>
    %16 = vector.multi_reduction <add>, %15, %cst_11 [1] : vector<16x32xf32> to vector<16xf32>
    %17 = vector.shape_cast %16 : vector<16xf32> to vector<16x1xf32>
    %cst_12 = arith.constant 3.200000e+01 : f32
    %18 = vector.broadcast %cst_12 : f32 to vector<16x1xf32>
    %19 = arith.divf %17, %18 : vector<16x1xf32>
    %20 = vector.broadcast %19 : vector<16x1xf32> to vector<16x32xf32>
    %21 = arith.subf %15, %20 : vector<16x32xf32>
    %22 = arith.mulf %21, %21 : vector<16x32xf32>
    %cst_13 = arith.constant dense<0.000000e+00> : vector<16xf32>
    %23 = vector.multi_reduction <add>, %22, %cst_13 [1] : vector<16x32xf32> to vector<16xf32>
    %24 = vector.shape_cast %23 : vector<16xf32> to vector<16x1xf32>
    %cst_14 = arith.constant 3.200000e+01 : f32
    %25 = vector.broadcast %cst_14 : f32 to vector<16x1xf32>
    %26 = arith.divf %24, %25 : vector<16x1xf32>
    %27 = vector.broadcast %19 : vector<16x1xf32> to vector<16x32xf32>
    %28 = arith.subf %15, %27 : vector<16x32xf32>
    %cst_15 = arith.constant 9.99999974E-6 : f32
    %29 = vector.broadcast %cst_15 : f32 to vector<16x1xf32>
    %30 = arith.addf %26, %29 : vector<16x1xf32>
    %31 = math.rsqrt %30 : vector<16x1xf32>
    %32 = vector.broadcast %31 : vector<16x1xf32> to vector<16x32xf32>
    %33 = arith.mulf %28, %32 : vector<16x32xf32>
    %c0_16 = arith.constant 0 : index
    %c0_17 = arith.constant 0 : index
    %34 = vector.load %arg6[%c0_16, %c0_17] : memref<1x32xf32, #tpu.memory_space<vmem>>, vector<1x32xf32>
    %35 = vector.broadcast %34 : vector<1x32xf32> to vector<16x32xf32>
    %36 = arith.mulf %33, %35 : vector<16x32xf32>
    %c0_18 = arith.constant 0 : index
    %c0_19 = arith.constant 0 : index
    %37 = vector.load %arg7[%c0_18, %c0_19] : memref<1x32xf32, #tpu.memory_space<vmem>>, vector<1x32xf32>
    %38 = vector.broadcast %37 : vector<1x32xf32> to vector<16x32xf32>
    %39 = arith.addf %36, %38 : vector<16x32xf32>
    %c0_20 = arith.constant 0 : index
    %c0_21 = arith.constant 0 : index
    %40 = vector.load %arg8[%c0_20, %c0_21] : memref<16x32xf32, #tpu.memory_space<vmem>>, vector<16x32xf32>
    tpu.vector_store %arg8[%c0_20, %c0_21], %39 {strides = array<i32>} : memref<16x32xf32, #tpu.memory_space<vmem>>, vector<16x32xf32>,
    return
  }
  func.func @transform_0(%arg0: i32) -> (i32, i32) {
    %c0_i32 = arith.constant 0 : i32
    %c0_i32_0 = arith.constant 0 : i32
    return %arg0, %c0_i32 : i32, i32
  }
  func.func @transform_1(%arg0: i32) -> (i32, i32) {
    %c0_i32 = arith.constant 0 : i32
    %c0_i32_0 = arith.constant 0 : i32
    %c0_i32_1 = arith.constant 0 : i32
    return %c0_i32, %c0_i32_0 : i32, i32
  }
  func.func @transform_2(%arg0: i32) -> (i32, i32) {
    %c0_i32 = arith.constant 0 : i32
    %c0_i32_0 = arith.constant 0 : i32
    %c0_i32_1 = arith.constant 0 : i32
    return %c0_i32, %c0_i32_0 : i32, i32
  }
  func.func @transform_3(%arg0: i32) -> (i32, i32) {
    %c0_i32 = arith.constant 0 : i32
    %c0_i32_0 = arith.constant 0 : i32
    %c0_i32_1 = arith.constant 0 : i32
    return %c0_i32, %c0_i32_0 : i32, i32
  }
  func.func @transform_4(%arg0: i32) -> (i32, i32) {
    %c0_i32 = arith.constant 0 : i32
    %c0_i32_0 = arith.constant 0 : i32
    %c0_i32_1 = arith.constant 0 : i32
    return %c0_i32, %c0_i32_0 : i32, i32
  }
  func.func @transform_5(%arg0: i32) -> (i32, i32) {
    %c0_i32 = arith.constant 0 : i32
    %c0_i32_0 = arith.constant 0 : i32
    %c0_i32_1 = arith.constant 0 : i32
    return %c0_i32, %c0_i32_0 : i32, i32
  }
  func.func @transform_6(%arg0: i32) -> (i32, i32) {
    %c0_i32 = arith.constant 0 : i32
    %c0_i32_0 = arith.constant 0 : i32
    %c0_i32_1 = arith.constant 0 : i32
    return %c0_i32, %c0_i32_0 : i32, i32
  }
  func.func @transform_7(%arg0: i32) -> (i32, i32) {
    %c0_i32 = arith.constant 0 : i32
    %c0_i32_0 = arith.constant 0 : i32
    return %arg0, %c0_i32 : i32, i32
  }
}

</mosaic_0001>

<llo_original>
// kernel: _lambda_.32
$region0: #{_lambda_.32}
  #allocation0 [shape = 'u32[]', space=smem, size = 0x4, offset = 0x4, fixed_abs, tag = 'smem constant byte address 0x4 - core index']
  #allocation1 [shape = 'u32[144,128]{1,0:T(1,128)}', space=vmem, size = 0x12000, scoped, tag = 'internal scratch']
  #allocation2 [shape = 'f32[16,96]{1,0:T(8,128)}', space=vmem, size = 0x2000, scoped, tag = 'scratch operand']
  %s0 = inlined_call_operand.vmem [shape: f32[16,32], index: 0, kind: input, shape index: {}]
  %s1 = inlined_call_operand.vmem [shape: bf16[32,96], index: 1, kind: input, shape index: {}]
  %s2 = inlined_call_operand.vmem [shape: f32[1,96], index: 2, kind: input, shape index: {}]
  %s3 = inlined_call_operand.vmem [shape: f32[16,96], index: 3, kind: output, shape index: {}]
  %s4 = sld [smem:[#allocation0]]
  $region30: #{_lambda_.32} parent=0
    _
  %s6 = ssub.s32 1, %s4
  %s7 = scalar_select 0, %s6, %s4
  // Predicated region
  $region2: #{_lambda_.32} parent=0 // pred_check
    _
  $region3: #{_lambda_.32} parent=0 // pred_check_branch
    %9 = sbr.rel (0) target = $region5
  $region4: #{_lambda_.32} parent=0 // pred_region
    _
  $region5: #{_lambda_.32} parent=0 // pred_fallthru
    _
  // Predicated region
  $region6: #{_lambda_.32} parent=0 // pred_check
    _
  $region7: #{_lambda_.32} parent=0 // pred_check_branch
    %11 = sbr.rel (0) target = $region9
  $region8: #{_lambda_.32} parent=0 // pred_region
    _
  $region9: #{_lambda_.32} parent=0 // pred_fallthru
    _
  // Predicated region
  $region10: #{_lambda_.32} parent=0 // pred_check
    _
  $region11: #{_lambda_.32} parent=0 // pred_check_branch
    %13 = sbr.rel (0) target = $region13
  $region12: #{_lambda_.32} parent=0 // pred_region
    _
  $region13: #{_lambda_.32} parent=0 // pred_fallthru
    _
  %p15 = scmp.eq.s32.totalorder 0, 0
  // Predicated region
  $region14: #{_lambda_.32} parent=0 // pred_check
    %p16 = pneg %p15
  $region15: #{_lambda_.32} parent=0 // pred_check_branch
    %18 = sbr.rel (%p16) target = $region17
  $region16: #{_lambda_.32} parent=0 // pred_region
    %vm19 = vcmask 785408
    %20 = vst.msk [vmem:[#allocation2] sm:$0xff] %vm19, 0.0
    %21 = vst.msk [vmem:[#allocation2 + $0x8] sm:$0xff] %vm19, 0.0
  $region17: #{_lambda_.32} parent=0 // pred_fallthru
    _
  %v22 = vld [vmem:[#allocation2] sm:$0xff]
  %v23 = vld [vmem:[#allocation2 + $0x8] sm:$0xff]
  %v24 = vld [vmem:[%s0] sm:$0xff]
  %v25 = vld [vmem:[%s0 + $0x8] sm:$0xff]
  %v26 = vpack.c.bf16 %v25, %v24
  %v27 = vld [vmem:[%s1] sm:$0xf]
  %v28 = vld [vmem:[%s1 + $0x4] sm:$0xf]
  %v29 = vld [vmem:[%s1 + $0x8] sm:$0xf]
  %v30 = vld [vmem:[%s1 + $0xc] sm:$0xf]
  %v35 = vunpack.c.l.b16 %v27
  %v36 = vunpack.c.l.b16 %v28
  %v37 = vunpack.c.l.b16 %v29
  %v38 = vunpack.c.l.b16 %v30
  %v39 = vpack.c.b16 %v36, %v35
  %v40 = vpack.c.b16 %v38, %v37
  %vm43 = vcmask 261120
  %v45 = vsel %vm43, %v26, 0
  %47 = vmatprep.subr.bf16.mxu0 0
  %48 = vmatpush1.bf16.msra.mxu0 0
  %49 = vmatprep.subr.bf16.mxu0 0
  %50 = vmatpush1.bf16.msra.mxu0 0
  %51 = vmatprep.subr.bf16.mxu0 0
  %52 = vmatpush1.bf16.msra.mxu0 0
  %53 = vmatprep.subr.bf16.mxu0 0
  %54 = vmatpush1.bf16.msra.mxu0 0
  %55 = vmatprep.subr.bf16.mxu0 0
  %56 = vmatpush1.bf16.msra.mxu0 0
  %57 = vmatprep.subr.bf16.mxu0 0
  %58 = vmatpush1.bf16.msra.mxu0 0
  %59 = vmatprep.subr.bf16.mxu0 0
  %60 = vmatpush1.bf16.msra.mxu0 %v40
  %61 = vmatprep.subr.bf16.mxu0 0
  %62 = vmatpush1.bf16.msra.mxu0 %v39
  %63 = vmatprep.subr.bf16.mxu0 0
  %64 = vmatpush2.bf16.msra.mxu0 0
  %65 = vmatprep.subr.bf16.mxu0 0
  %66 = vmatpush2.bf16.msra.mxu0 0
  %67 = vmatprep.subr.bf16.mxu0 0
  %68 = vmatpush2.bf16.msra.mxu0 0
  %69 = vmatprep.subr.bf16.mxu0 0
  %70 = vmatpush2.bf16.msra.mxu0 0
  %71 = vmatprep.subr.bf16.mxu0 0
  %72 = vmatpush2.bf16.msra.mxu0 0
  %73 = vmatprep.subr.bf16.mxu0 0
  %74 = vmatpush2.bf16.msra.mxu0 0
  %75 = vmatprep.subr.bf16.mxu0 0
  %76 = vmatpush2.bf16.msra.mxu0 0
  %77 = vmatprep.subr.bf16.mxu0 0
  %78 = vmatpush2.bf16.msra.mxu0 0
  %79 = vmatprep.mubr.bf16.mxu0 0
  %80 = vmatmul.mubr.bf16.gmra.mxu0 %v45
  %v81 = vpop.f32.mrf.mxu0
  %v82 = vadd.f32 0.0, %v81
  %v83 = vpop.f32.mrf.mxu0
  %v84 = vpop.f32.mrf.mxu0
  %v85 = vadd.f32 0.0, %v84
  %v86 = vpop.f32.mrf.mxu0
  %87 = vdwg.mxu0
  %v88 = vadd.f32 %v22, %v82
  %v89 = vadd.f32 %v23, %v85
  %vm90 = vcmask 785408
  %91 = vst.msk [vmem:[#allocation2] sm:$0xff] %vm90, %v88
  %92 = vst.msk [vmem:[#allocation2 + $0x8] sm:$0xff] %vm90, %v89
  // Predicated region
  $region18: #{_lambda_.32} parent=0 // pred_check
    %p93 = pneg %p15
  $region19: #{_lambda_.32} parent=0 // pred_check_branch
    %95 = sbr.rel (%p93) target = $region21
  $region20: #{_lambda_.32} parent=0 // pred_region
    %v96 = vld [vmem:[#allocation2] sm:$0xff]
    %v97 = vld [vmem:[#allocation2 + $0x8] sm:$0xff]
    %v98 = vld [vmem:[%s2] sm:$0x1]
    %v100 = vlaneseq
    %v101 = vshrl.u32 %v100, 7
    %v102 = vsub.s32 0, %v101
    %v103 = vrot.slane %v98, %v102
    %v105 = vadd.f32 %v96, %v103
    %v106 = vadd.f32 %v97, %v103
    %107 = vst.msk [vmem:[%s3] sm:$0xff] %vm90, %v105
    %108 = vst.msk [vmem:[%s3 + $0x8] sm:$0xff] %vm90, %v106
  $region21: #{_lambda_.32} parent=0 // pred_fallthru
    _
  // Predicated region
  $region22: #{_lambda_.32} parent=0 // pred_check
    _
  $region23: #{_lambda_.32} parent=0 // pred_check_branch
    %110 = sbr.rel (0) target = $region25
  $region24: #{_lambda_.32} parent=0 // pred_region
    _
  $region25: #{_lambda_.32} parent=0 // pred_fallthru
    _
  // Predicated region
  $region26: #{_lambda_.32} parent=0 // pred_check
    _
  $region27: #{_lambda_.32} parent=0 // pred_check_branch
    %112 = sbr.rel (0) target = $region29
  $region28: #{_lambda_.32} parent=0 // pred_region
    _
  $region29: #{_lambda_.32} parent=0 // pred_fallthru
    _

// kernel: _lambda_.35
$region0: #{_lambda_.35}
  #allocation0 [shape = 'u32[]', space=smem, size = 0x4, offset = 0x4, fixed_abs, tag = 'smem constant byte address 0x4 - core index']
  #allocation1 [shape = 'u32[144,128]{1,0:T(1,128)}', space=vmem, size = 0x12000, scoped, tag = 'internal scratch']
  #allocation2 [shape = 'f32[16,32]{1,0:T(8,128)}', space=vmem, size = 0x2000, scoped, tag = 'scratch operand']
  %s0 = inlined_call_operand.vmem [shape: f32[16,32], index: 0, kind: input, shape index: {}]
  %s1 = inlined_call_operand.vmem [shape: bf16[32,32], index: 1, kind: input, shape index: {}]
  %s2 = inlined_call_operand.vmem [shape: f32[1,32], index: 2, kind: input, shape index: {}]
  %s3 = inlined_call_operand.vmem [shape: f32[16,32], index: 3, kind: output, shape index: {}]
  %s4 = sld [smem:[#allocation0]]
  $region30: #{_lambda_.35} parent=0
    _
  %s6 = ssub.s32 1, %s4
  %s7 = scalar_select 0, %s6, %s4
  // Predicated region
  $region2: #{_lambda_.35} parent=0 // pred_check
    _
  $region3: #{_lambda_.35} parent=0 // pred_check_branch
    %9 = sbr.rel (0) target = $region5
  $region4: #{_lambda_.35} parent=0 // pred_region
    _
  $region5: #{_lambda_.35} parent=0 // pred_fallthru
    _
  // Predicated region
  $region6: #{_lambda_.35} parent=0 // pred_check
    _
  $region7: #{_lambda_.35} parent=0 // pred_check_branch
    %11 = sbr.rel (0) target = $region9
  $region8: #{_lambda_.35} parent=0 // pred_region
    _
  $region9: #{_lambda_.35} parent=0 // pred_fallthru
    _
  // Predicated region
  $region10: #{_lambda_.35} parent=0 // pred_check
    _
  $region11: #{_lambda_.35} parent=0 // pred_check_branch
    %13 = sbr.rel (0) target = $region13
  $region12: #{_lambda_.35} parent=0 // pred_region
    _
  $region13: #{_lambda_.35} parent=0 // pred_fallthru
    _
  %p15 = scmp.eq.s32.totalorder 0, 0
  // Predicated region
  $region14: #{_lambda_.35} parent=0 // pred_check
    %p16 = pneg %p15
  $region15: #{_lambda_.35} parent=0 // pred_check_branch
    %18 = sbr.rel (%p16) target = $region17
  $region16: #{_lambda_.35} parent=0 // pred_region
    %vm19 = vcmask 261120
    %20 = vst.msk [vmem:[#allocation2] sm:$0xff] %vm19, 0.0
    %21 = vst.msk [vmem:[#allocation2 + $0x8] sm:$0xff] %vm19, 0.0
  $region17: #{_lambda_.35} parent=0 // pred_fallthru
    _
  %v22 = vld [vmem:[#allocation2] sm:$0xff]
  %v23 = vld [vmem:[#allocation2 + $0x8] sm:$0xff]
  %v24 = vld [vmem:[%s0] sm:$0xff]
  %v25 = vld [vmem:[%s0 + $0x8] sm:$0xff]
  %v26 = vpack.c.bf16 %v25, %v24
  %v27 = vld [vmem:[%s1] sm:$0xf]
  %v28 = vld [vmem:[%s1 + $0x4] sm:$0xf]
  %v29 = vld [vmem:[%s1 + $0x8] sm:$0xf]
  %v30 = vld [vmem:[%s1 + $0xc] sm:$0xf]
  %v35 = vunpack.c.l.b16 %v27
  %v36 = vunpack.c.l.b16 %v28
  %v37 = vunpack.c.l.b16 %v29
  %v38 = vunpack.c.l.b16 %v30
  %v39 = vpack.c.b16 %v36, %v35
  %v40 = vpack.c.b16 %v38, %v37
  %vm43 = vcmask 261120
  %v45 = vsel %vm43, %v26, 0
  %47 = vmatprep.subr.bf16.mxu0 0
  %48 = vmatpush1.bf16.msra.mxu0 0
  %49 = vmatprep.subr.bf16.mxu0 0
  %50 = vmatpush1.bf16.msra.mxu0 0
  %51 = vmatprep.subr.bf16.mxu0 0
  %52 = vmatpush1.bf16.msra.mxu0 0
  %53 = vmatprep.subr.bf16.mxu0 0
  %54 = vmatpush1.bf16.msra.mxu0 0
  %55 = vmatprep.subr.bf16.mxu0 0
  %56 = vmatpush1.bf16.msra.mxu0 0
  %57 = vmatprep.subr.bf16.mxu0 0
  %58 = vmatpush1.bf16.msra.mxu0 0
  %59 = vmatprep.subr.bf16.mxu0 0
  %60 = vmatpush1.bf16.msra.mxu0 %v40
  %61 = vmatprep.subr.bf16.mxu0 0
  %62 = vmatpush1.bf16.msra.mxu0 %v39
  %63 = vmatprep.subr.bf16.mxu0 0
  %64 = vmatpush2.bf16.msra.mxu0 0
  %65 = vmatprep.subr.bf16.mxu0 0
  %66 = vmatpush2.bf16.msra.mxu0 0
  %67 = vmatprep.subr.bf16.mxu0 0
  %68 = vmatpush2.bf16.msra.mxu0 0
  %69 = vmatprep.subr.bf16.mxu0 0
  %70 = vmatpush2.bf16.msra.mxu0 0
  %71 = vmatprep.subr.bf16.mxu0 0
  %72 = vmatpush2.bf16.msra.mxu0 0
  %73 = vmatprep.subr.bf16.mxu0 0
  %74 = vmatpush2.bf16.msra.mxu0 0
  %75 = vmatprep.subr.bf16.mxu0 0
  %76 = vmatpush2.bf16.msra.mxu0 0
  %77 = vmatprep.subr.bf16.mxu0 0
  %78 = vmatpush2.bf16.msra.mxu0 0
  %79 = vmatprep.mubr.bf16.mxu0 0
  %80 = vmatmul.mubr.bf16.gmra.mxu0 %v45
  %v81 = vpop.f32.mrf.mxu0
  %v82 = vadd.f32 0.0, %v81
  %v83 = vpop.f32.mrf.mxu0
  %v84 = vpop.f32.mrf.mxu0
  %v85 = vadd.f32 0.0, %v84
  %v86 = vpop.f32.mrf.mxu0
  %87 = vdwg.mxu0
  %v88 = vadd.f32 %v22, %v82
  %v89 = vadd.f32 %v23, %v85
  %90 = vst.msk [vmem:[#allocation2] sm:$0xff] %vm43, %v88
  %91 = vst.msk [vmem:[#allocation2 + $0x8] sm:$0xff] %vm43, %v89
  // Predicated region
  $region18: #{_lambda_.35} parent=0 // pred_check
    %p92 = pneg %p15
  $region19: #{_lambda_.35} parent=0 // pred_check_branch
    %94 = sbr.rel (%p92) target = $region21
  $region20: #{_lambda_.35} parent=0 // pred_region
    %v95 = vld [vmem:[#allocation2] sm:$0xff]
    %v96 = vld [vmem:[#allocation2 + $0x8] sm:$0xff]
    %v97 = vld [vmem:[%s2] sm:$0x1]
    %v99 = vlaneseq
    %v100 = vshrl.u32 %v99, 7
    %v101 = vsub.s32 0, %v100
    %v102 = vrot.slane %v97, %v101
    %v104 = vadd.f32 %v95, %v102
    %v105 = vadd.f32 %v96, %v102
    %106 = vst.msk [vmem:[%s3] sm:$0xff] %vm43, %v104
    %107 = vst.msk [vmem:[%s3 + $0x8] sm:$0xff] %vm43, %v105
  $region21: #{_lambda_.35} parent=0 // pred_fallthru
    _
  // Predicated region
  $region22: #{_lambda_.35} parent=0 // pred_check
    _
  $region23: #{_lambda_.35} parent=0 // pred_check_branch
    %109 = sbr.rel (0) target = $region25
  $region24: #{_lambda_.35} parent=0 // pred_region
    _
  $region25: #{_lambda_.35} parent=0 // pred_fallthru
    _
  // Predicated region
  $region26: #{_lambda_.35} parent=0 // pred_check
    _
  $region27: #{_lambda_.35} parent=0 // pred_check_branch
    %111 = sbr.rel (0) target = $region29
  $region28: #{_lambda_.35} parent=0 // pred_region
    _
  $region29: #{_lambda_.35} parent=0 // pred_fallthru
    _

// kernel: _lambda_.34
$region0: #{_lambda_.34}
  #allocation0 [shape = 'u32[]', space=smem, size = 0x4, offset = 0x4, fixed_abs, tag = 'smem constant byte address 0x4 - core index']
  #allocation1 [shape = 'u32[144,128]{1,0:T(1,128)}', space=vmem, size = 0x12000, scoped, tag = 'internal scratch']
  %s0 = inlined_call_operand.vmem [shape: f32[16,32], index: 0, kind: input, shape index: {}]
  %s1 = inlined_call_operand.vmem [shape: bf16[32,32], index: 1, kind: input, shape index: {}]
  %s2 = inlined_call_operand.vmem [shape: f32[1,32], index: 2, kind: input, shape index: {}]
  %s3 = inlined_call_operand.vmem [shape: f32[16,32], index: 3, kind: input, shape index: {}]
  %s4 = inlined_call_operand.vmem [shape: f32[1,32], index: 4, kind: input, shape index: {}]
  %s5 = inlined_call_operand.vmem [shape: f32[1,32], index: 5, kind: input, shape index: {}]
  %s6 = inlined_call_operand.vmem [shape: f32[16,32], index: 6, kind: output, shape index: {}]
  %s7 = sld [smem:[#allocation0]]
  $region34: #{_lambda_.34} parent=0
    _
  %s9 = ssub.s32 1, %s7
  %s10 = scalar_select 0, %s9, %s7
  // Predicated region
  $region2: #{_lambda_.34} parent=0 // pred_check
    _
  $region3: #{_lambda_.34} parent=0 // pred_check_branch
    %12 = sbr.rel (0) target = $region5
  $region4: #{_lambda_.34} parent=0 // pred_region
    _
  $region5: #{_lambda_.34} parent=0 // pred_fallthru
    _
  // Predicated region
  $region6: #{_lambda_.34} parent=0 // pred_check
    _
  $region7: #{_lambda_.34} parent=0 // pred_check_branch
    %14 = sbr.rel (0) target = $region9
  $region8: #{_lambda_.34} parent=0 // pred_region
    _
  $region9: #{_lambda_.34} parent=0 // pred_fallthru
    _
  // Predicated region
  $region10: #{_lambda_.34} parent=0 // pred_check
    _
  $region11: #{_lambda_.34} parent=0 // pred_check_branch
    %16 = sbr.rel (0) target = $region13
  $region12: #{_lambda_.34} parent=0 // pred_region
    _
  $region13: #{_lambda_.34} parent=0 // pred_fallthru
    _
  // Predicated region
  $region14: #{_lambda_.34} parent=0 // pred_check
    _
  $region15: #{_lambda_.34} parent=0 // pred_check_branch
    %18 = sbr.rel (0) target = $region17
  $region16: #{_lambda_.34} parent=0 // pred_region
    _
  $region17: #{_lambda_.34} parent=0 // pred_fallthru
    _
  // Predicated region
  $region18: #{_lambda_.34} parent=0 // pred_check
    _
  $region19: #{_lambda_.34} parent=0 // pred_check_branch
    %20 = sbr.rel (0) target = $region21
  $region20: #{_lambda_.34} parent=0 // pred_region
    _
  $region21: #{_lambda_.34} parent=0 // pred_fallthru
    _
  // Predicated region
  $region22: #{_lambda_.34} parent=0 // pred_check
    _
  $region23: #{_lambda_.34} parent=0 // pred_check_branch
    %22 = sbr.rel (0) target = $region25
  $region24: #{_lambda_.34} parent=0 // pred_region
    _
  $region25: #{_lambda_.34} parent=0 // pred_fallthru
    _
  %v24 = vld [vmem:[%s0] sm:$0xff]
  %v25 = vld [vmem:[%s0 + $0x8] sm:$0xff]
  %v26 = vpack.c.bf16 %v25, %v24
  %v27 = vld [vmem:[%s1] sm:$0xf]
  %v28 = vld [vmem:[%s1 + $0x4] sm:$0xf]
  %v29 = vld [vmem:[%s1 + $0x8] sm:$0xf]
  %v30 = vld [vmem:[%s1 + $0xc] sm:$0xf]
  %v31 = vld [vmem:[%s2] sm:$0x1]
  %v33 = vlaneseq
  %v34 = vshrl.u32 %v33, 7
  %v35 = vsub.s32 0, %v34
  %v36 = vrot.slane %v31, %v35
  %v42 = vunpack.c.l.b16 %v27
  %v43 = vunpack.c.l.b16 %v28
  %v44 = vunpack.c.l.b16 %v29
  %v45 = vunpack.c.l.b16 %v30
  %v46 = vpack.c.b16 %v43, %v42
  %v47 = vpack.c.b16 %v45, %v44
  %vm50 = vcmask 261120
  %v52 = vsel %vm50, %v26, 0
  %54 = vmatprep.subr.bf16.mxu0 0
  %55 = vmatpush1.bf16.msra.mxu0 0
  %56 = vmatprep.subr.bf16.mxu0 0
  %57 = vmatpush1.bf16.msra.mxu0 0
  %58 = vmatprep.subr.bf16.mxu0 0
  %59 = vmatpush1.bf16.msra.mxu0 0
  %60 = vmatprep.subr.bf16.mxu0 0
  %61 = vmatpush1.bf16.msra.mxu0 0
  %62 = vmatprep.subr.bf16.mxu0 0
  %63 = vmatpush1.bf16.msra.mxu0 0
  %64 = vmatprep.subr.bf16.mxu0 0
  %65 = vmatpush1.bf16.msra.mxu0 0
  %66 = vmatprep.subr.bf16.mxu0 0
  %67 = vmatpush1.bf16.msra.mxu0 %v47
  %68 = vmatprep.subr.bf16.mxu0 0
  %69 = vmatpush1.bf16.msra.mxu0 %v46
  %70 = vmatprep.subr.bf16.mxu0 0
  %71 = vmatpush2.bf16.msra.mxu0 0
  %72 = vmatprep.subr.bf16.mxu0 0
  %73 = vmatpush2.bf16.msra.mxu0 0
  %74 = vmatprep.subr.bf16.mxu0 0
  %75 = vmatpush2.bf16.msra.mxu0 0
  %76 = vmatprep.subr.bf16.mxu0 0
  %77 = vmatpush2.bf16.msra.mxu0 0
  %78 = vmatprep.subr.bf16.mxu0 0
  %79 = vmatpush2.bf16.msra.mxu0 0
  %80 = vmatprep.subr.bf16.mxu0 0
  %81 = vmatpush2.bf16.msra.mxu0 0
  %82 = vmatprep.subr.bf16.mxu0 0
  %83 = vmatpush2.bf16.msra.mxu0 0
  %84 = vmatprep.subr.bf16.mxu0 0
  %85 = vmatpush2.bf16.msra.mxu0 0
  %86 = vmatprep.mubr.bf16.mxu0 0
  %87 = vmatmul.mubr.bf16.gmra.mxu0 %v52
  %v88 = vpop.f32.mrf.mxu0
  %v89 = vadd.f32 %v36, %v88
  %v90 = vpop.f32.mrf.mxu0
  %v91 = vpop.f32.mrf.mxu0
  %v92 = vadd.f32 %v36, %v91
  %v93 = vpop.f32.mrf.mxu0
  %94 = vdwg.mxu0
  %v95 = vld [vmem:[%s3] sm:$0xff]
  %v96 = vld [vmem:[%s3 + $0x8] sm:$0xff]
  %v97 = vadd.f32 %v95, %v89
  %v98 = vadd.f32 %v96, %v92
  %v99 = vsel %vm50, %v97, 0.0
  %100 = vadd.xlane.f32.xlu0 %v99
  %v101 = vpop.xlane.xlu0 %100
  %v102 = vsel %vm50, %v98, 0.0
  %103 = vadd.xlane.f32.xlu0 %v102
  %v104 = vpop.xlane.xlu0 %103
  %v105 = vrcp.pop 32.0
  %v106 = vmul.f32 %v101, %v105
  %v107 = vmul.f32 %v104, %v105
  %v108 = vsub.f32 %v97, %v106
  %v109 = vsub.f32 %v98, %v107
  %v110 = vmul.f32 %v108, %v108
  %v111 = vmul.f32 %v109, %v109
  %v112 = vsel %vm50, %v110, 0.0
  %113 = vadd.xlane.f32.xlu0 %v112
  %v114 = vpop.xlane.xlu0 %113
  %v115 = vsel %vm50, %v111, 0.0
  %116 = vadd.xlane.f32.xlu0 %v115
  %v117 = vpop.xlane.xlu0 %116
  %v118 = vmul.f32 %v114, %v105
  %v119 = vmul.f32 %v117, %v105
  %v120 = vadd.f32 %v118, 1e-05
  %v121 = vadd.f32 %v119, 1e-05
  %v122 = vrsqrt.pop %v120
  %v123 = vrsqrt.pop %v121
  %v124 = vmul.f32 %v108, %v122
  %v125 = vmul.f32 %v109, %v123
  %v126 = vld [vmem:[%s4] sm:$0x1]
  %v128 = vlaneseq
  %v129 = vshrl.u32 %v128, 7
  %v130 = vsub.s32 0, %v129
  %v131 = vrot.slane %v126, %v130
  %v133 = vmul.f32 %v124, %v131
  %v134 = vmul.f32 %v125, %v131
  %v135 = vld [vmem:[%s5] sm:$0x1]
  %v137 = vlaneseq
  %v138 = vshrl.u32 %v137, 7
  %v139 = vsub.s32 0, %v138
  %v140 = vrot.slane %v135, %v139
  %v142 = vadd.f32 %v133, %v140
  %v143 = vadd.f32 %v134, %v140
  %144 = vst.msk [vmem:[%s6] sm:$0xff] %vm50, %v142
  %145 = vst.msk [vmem:[%s6 + $0x8] sm:$0xff] %vm50, %v143
  // Predicated region
  $region26: #{_lambda_.34} parent=0 // pred_check
    _
  $region27: #{_lambda_.34} parent=0 // pred_check_branch
    %147 = sbr.rel (0) target = $region29
  $region28: #{_lambda_.34} parent=0 // pred_region
    _
  $region29: #{_lambda_.34} parent=0 // pred_fallthru
    _
  // Predicated region
  $region30: #{_lambda_.34} parent=0 // pred_check
    _
  $region31: #{_lambda_.34} parent=0 // pred_check_branch
    %149 = sbr.rel (0) target = $region33
  $region32: #{_lambda_.34} parent=0 // pred_region
    _
  $region33: #{_lambda_.34} parent=0 // pred_fallthru
    _

// kernel: _lambda_.33
$region0: #{_lambda_.33}
  #allocation0 [shape = 'u32[]', space=smem, size = 0x4, offset = 0x4, fixed_abs, tag = 'smem constant byte address 0x4 - core index']
  #allocation1 [shape = 'u32[144,128]{1,0:T(1,128)}', space=vmem, size = 0x12000, scoped, tag = 'internal scratch']
  %s0 = inlined_call_operand.vmem [shape: f32[2,8,32], index: 0, kind: input, shape index: {}]
  %s1 = inlined_call_operand.vmem [shape: f32[2,8,32], index: 1, kind: input, shape index: {}]
  %s2 = inlined_call_operand.vmem [shape: f32[2,8,32], index: 2, kind: input, shape index: {}]
  %s3 = inlined_call_operand.vmem [shape: f32[2,8,8], index: 3, kind: input, shape index: {}]
  %s4 = inlined_call_operand.vmem [shape: f32[2,8,32], index: 4, kind: output, shape index: {}]
  %s5 = sld [smem:[#allocation0]]
  $region49: #{_lambda_.33} parent=0
    _
  %s7 = ssub.s32 1, %s5
  %s8 = scalar_select 0, %s7, %s5
  loop: start=0, step=1, limit=4
  $region2: #{_lambda_.33} parent=0 // loop_pre_header
    _
  $region3: #{_lambda_.33} parent=0 // loop_header
    %s10 = sphi 0, %s14
    %p11 = scmp.ge.s32.totalorder %s10, 4
    %s20 = sphi 0, %s22
    %s23 = sphi 0, %s20
    %s24 = sphi 0, %s23
    %s40 = sphi 0, %s24
    %s46 = sphi 0, %s48
    %s49 = sphi 0, %s46
    %s50 = sphi 0, %s49
    %s66 = sphi 0, %s50
    %s72 = sphi 0, %s74
    %s75 = sphi 0, %s72
    %s76 = sphi 0, %s75
    %s92 = sphi 0, %s76
    %s98 = sphi 0, %s100
    %s101 = sphi 0, %s98
    %s102 = sphi 0, %s101
    %s118 = sphi 0, %s102
    %s124 = sphi 0, %s126
    %s127 = sphi 0, %s124
    %s128 = sphi 0, %s127
    %s144 = sphi 0, %s128
  $region4: #{_lambda_.33} parent=0 // loop_header_branch
    %13 = sbr.rel (%p11) target = $region8
  $region5: #{_lambda_.33} parent=0 // loop_body
    %s15 = ssub.s32 %s10, 1
    %s16 = ssub.s32 %s10, 2
    %s17 = sadd.s32 %s10, 1
    %s18 = ssub.s32 %s10, %s17
    %p19 = scmp.eq.s32.totalorder %s18, 0
    %s21 = sadd.s32 %s20, 1
    %s22 = scalar_select %p19, %s20, %s21
    %p25 = pneg %p19
    %p26 = scmp.eq.s32.totalorder %s10, 1
    %p27 = por %p25, %p26
    %p28 = scmp.ne.s32.totalorder %s20, %s23
    %p29 = scmp.eq.s32.totalorder %s10, 0
    %p30 = por %p28, %p29
    %p31 = scmp.ne.s32.totalorder %s20, %s23
    %p32 = scmp.eq.s32.totalorder %s15, 1
    %p33 = por %p31, %p32
    %p34 = scmp.ne.s32.totalorder %s23, %s24
    %p35 = scmp.eq.s32.totalorder %s15, 0
    %p36 = por %p34, %p35
    %p37 = scmp.ne.s32.totalorder %s23, %s24
    %p38 = scmp.eq.s32.totalorder %s16, 1
    %p39 = por %p37, %p38
    %p41 = scmp.ne.s32.totalorder %s24, %s40
    %p42 = scmp.eq.s32.totalorder %s16, 0
    %p43 = por %p41, %p42
    %s44 = ssub.s32 %s10, %s17
    %p45 = scmp.eq.s32.totalorder %s44, 0
    %s47 = sadd.s32 %s46, 1
    %s48 = scalar_select %p45, %s46, %s47
    %p51 = pneg %p45
    %p52 = scmp.eq.s32.totalorder %s10, 1
    %p53 = por %p51, %p52
    %p54 = scmp.ne.s32.totalorder %s46, %s49
    %p55 = scmp.eq.s32.totalorder %s10, 0
    %p56 = por %p54, %p55
    %p57 = scmp.ne.s32.totalorder %s46, %s49
    %p58 = scmp.eq.s32.totalorder %s15, 1
    %p59 = por %p57, %p58
    %p60 = scmp.ne.s32.totalorder %s49, %s50
    %p61 = scmp.eq.s32.totalorder %s15, 0
    %p62 = por %p60, %p61
    %p63 = scmp.ne.s32.totalorder %s49, %s50
    %p64 = scmp.eq.s32.totalorder %s16, 1
    %p65 = por %p63, %p64
    %p67 = scmp.ne.s32.totalorder %s50, %s66
    %p68 = scmp.eq.s32.totalorder %s16, 0
    %p69 = por %p67, %p68
    %s70 = ssub.s32 %s10, %s17
    %p71 = scmp.eq.s32.totalorder %s70, 0
    %s73 = sadd.s32 %s72, 1
    %s74 = scalar_select %p71, %s72, %s73
    %p77 = pneg %p71
    %p78 = scmp.eq.s32.totalorder %s10, 1
    %p79 = por %p77, %p78
    %p80 = scmp.ne.s32.totalorder %s72, %s75
    %p81 = scmp.eq.s32.totalorder %s10, 0
    %p82 = por %p80, %p81
    %p83 = scmp.ne.s32.totalorder %s72, %s75
    %p84 = scmp.eq.s32.totalorder %s15, 1
    %p85 = por %p83, %p84
    %p86 = scmp.ne.s32.totalorder %s75, %s76
    %p87 = scmp.eq.s32.totalorder %s15, 0
    %p88 = por %p86, %p87
    %p89 = scmp.ne.s32.totalorder %s75, %s76
    %p90 = scmp.eq.s32.totalorder %s16, 1
    %p91 = por %p89, %p90
    %p93 = scmp.ne.s32.totalorder %s76, %s92
    %p94 = scmp.eq.s32.totalorder %s16, 0
    %p95 = por %p93, %p94
    %s96 = ssub.s32 %s10, %s17
    %p97 = scmp.eq.s32.totalorder %s96, 0
    %s99 = sadd.s32 %s98, 1
    %s100 = scalar_select %p97, %s98, %s99
    %p103 = pneg %p97
    %p104 = scmp.eq.s32.totalorder %s10, 1
    %p105 = por %p103, %p104
    %p106 = scmp.ne.s32.totalorder %s98, %s101
    %p107 = scmp.eq.s32.totalorder %s10, 0
    %p108 = por %p106, %p107
    %p109 = scmp.ne.s32.totalorder %s98, %s101
    %p110 = scmp.eq.s32.totalorder %s15, 1
    %p111 = por %p109, %p110
    %p112 = scmp.ne.s32.totalorder %s101, %s102
    %p113 = scmp.eq.s32.totalorder %s15, 0
    %p114 = por %p112, %p113
    %p115 = scmp.ne.s32.totalorder %s101, %s102
    %p116 = scmp.eq.s32.totalorder %s16, 1
    %p117 = por %p115, %p116
    %p119 = scmp.ne.s32.totalorder %s102, %s118
    %p120 = scmp.eq.s32.totalorder %s16, 0
    %p121 = por %p119, %p120
    %s122 = ssub.s32 %s10, %s17
    %p123 = scmp.eq.s32.totalorder %s122, 0
    %s125 = sadd.s32 %s124, 1
    %s126 = scalar_select %p123, %s124, %s125
    %p129 = pneg %p123
    %p130 = scmp.eq.s32.totalorder %s10, 1
    %p131 = por %p129, %p130
    %p132 = scmp.ne.s32.totalorder %s124, %s127
    %p133 = scmp.eq.s32.totalorder %s10, 0
    %p134 = por %p132, %p133
    %p135 = scmp.ne.s32.totalorder %s124, %s127
    %p136 = scmp.eq.s32.totalorder %s15, 1
    %p137 = por %p135, %p136
    %p138 = scmp.ne.s32.totalorder %s127, %s128
    %p139 = scmp.eq.s32.totalorder %s15, 0
    %p140 = por %p138, %p139
    %p141 = scmp.ne.s32.totalorder %s127, %s128
    %p142 = scmp.eq.s32.totalorder %s16, 1
    %p143 = por %p141, %p142
    %p145 = scmp.ne.s32.totalorder %s128, %s144
    %p146 = scmp.eq.s32.totalorder %s16, 0
    %p147 = por %p145, %p146
    %p148 = scmp.le.s32.totalorder 1, %s10
    %p149 = scmp.lt.s32.totalorder %s10, 3
    %p150 = pnand %p148, %p149
    %p151 = pneg %p150
    // Predicated region
    $region9: #{_lambda_.33} parent=5 // pred_check
      _
    $region10: #{_lambda_.33} parent=5 // pred_check_branch
      %153 = sbr.rel (%p150) target = $region12
    $region11: #{_lambda_.33} parent=5 // pred_region
      %s154 = ssub.s32 %s10, 1
    $region12: #{_lambda_.33} parent=5 // pred_fallthru
      _
    %p155 = scmp.lt.s32.totalorder %s10, 2
    // Predicated region
    $region13: #{_lambda_.33} parent=5 // pred_check
      %p156 = pneg %p155
    $region14: #{_lambda_.33} parent=5 // pred_check_branch
      %158 = sbr.rel (%p156) target = $region16
    $region15: #{_lambda_.33} parent=5 // pred_region
      // Predicated region
      $region17: #{_lambda_.33} parent=15 // pred_check
        %p159 = pneg %p30
      $region18: #{_lambda_.33} parent=15 // pred_check_branch
        %161 = sbr.rel (%p159) target = $region20
      $region19: #{_lambda_.33} parent=15 // pred_region
        %p162 = scmp.lt.s32.totalorder %s10, 1
        %s163 = scalar_select %p162, %s10, 1
        %s164 = smul.addr %s163, 8
        %s165 = scalar_lea.vmem %s0, %s164
      $region20: #{_lambda_.33} parent=15 // pred_fallthru
        _
      // Predicated region
      $region21: #{_lambda_.33} parent=15 // pred_check
        %p166 = pneg %p56
      $region22: #{_lambda_.33} parent=15 // pred_check_branch
        %168 = sbr.rel (%p166) target = $region24
      $region23: #{_lambda_.33} parent=15 // pred_region
        %p169 = scmp.lt.s32.totalorder %s10, 1
        %s170 = scalar_select %p169, %s10, 1
        %s171 = smul.addr %s170, 8
        %s172 = scalar_lea.vmem %s1, %s171
      $region24: #{_lambda_.33} parent=15 // pred_fallthru
        _
      // Predicated region
      $region25: #{_lambda_.33} parent=15 // pred_check
        %p173 = pneg %p82
      $region26: #{_lambda_.33} parent=15 // pred_check_branch
        %175 = sbr.rel (%p173) target = $region28
      $region27: #{_lambda_.33} parent=15 // pred_region
        %p176 = scmp.lt.s32.totalorder %s10, 1
        %s177 = scalar_select %p176, %s10, 1
        %s178 = smul.addr %s177, 8
        %s179 = scalar_lea.vmem %s2, %s178
      $region28: #{_lambda_.33} parent=15 // pred_fallthru
        _
      // Predicated region
      $region29: #{_lambda_.33} parent=15 // pred_check
        %p180 = pneg %p108
      $region30: #{_lambda_.33} parent=15 // pred_check_branch
        %182 = sbr.rel (%p180) target = $region32
      $region31: #{_lambda_.33} parent=15 // pred_region
        %p183 = scmp.lt.s32.totalorder %s10, 1
        %s184 = scalar_select %p183, %s10, 1
        %s185 = smul.addr %s184, 8
        %s186 = scalar_lea.vmem %s3, %s185
      $region32: #{_lambda_.33} parent=15 // pred_fallthru
        _
    $region16: #{_lambda_.33} parent=5 // pred_fallthru
      _
    %p187 = scmp.le.s32.totalorder 1, %s10
    %p188 = scmp.lt.s32.totalorder %s10, 3
    %p189 = pnand %p187, %p188
    %p190 = pneg %p189
    // Predicated region
    $region33: #{_lambda_.33} parent=5 // pred_check
      _
    $region34: #{_lambda_.33} parent=5 // pred_check_branch
      %192 = sbr.rel (%p189) target = $region36
    $region35: #{_lambda_.33} parent=5 // pred_region
      %s193 = ssub.s32 %s10, 1
      %p194 = scmp.lt.s32.totalorder %s15, 1
      %s195 = scalar_select %p194, %s15, 1
      %s196 = smul.addr %s195, 8
      %s197 = scalar_lea.vmem %s0, %s196
      %p198 = pneg %p36
      %p199 = pneg %p33
      %p200 = scmp.lt.s32.totalorder %s15, 1
      %s201 = scalar_select %p200, %s15, 1
      %s202 = smul.addr %s201, 8
      %s203 = scalar_lea.vmem %s1, %s202
      %p204 = pneg %p62
      %p205 = pneg %p59
      %p206 = scmp.lt.s32.totalorder %s15, 1
      %s207 = scalar_select %p206, %s15, 1
      %s208 = smul.addr %s207, 8
      %s209 = scalar_lea.vmem %s2, %s208
      %p210 = pneg %p88
      %p211 = pneg %p85
      %p212 = scmp.lt.s32.totalorder %s15, 1
      %s213 = scalar_select %p212, %s15, 1
      %s214 = smul.addr %s213, 8
      %s215 = scalar_lea.vmem %s3, %s214
      %p216 = pneg %p114
      %p217 = pneg %p111
      %p218 = pneg %p140
      %p219 = pneg %p137
      %p220 = scmp.lt.s32.totalorder %s15, 1
      %s221 = scalar_select %p220, %s15, 1
      %s222 = smul.addr %s221, 8
      %s223 = scalar_lea.vmem %s4, %s222
      %p224 = scmp.lt.s32.totalorder %s15, 1
      %s225 = scalar_select %p224, %s15, 1
      %s226 = smul.addr %s225, 8
      %s227 = scalar_lea.vmem %s0, %s226
      %p228 = scmp.lt.s32.totalorder %s15, 1
      %s229 = scalar_select %p228, %s15, 1
      %s230 = smul.addr %s229, 8
      %s231 = scalar_lea.vmem %s1, %s230
      %p232 = scmp.lt.s32.totalorder %s15, 1
      %s233 = scalar_select %p232, %s15, 1
      %s234 = smul.addr %s233, 8
      %s235 = scalar_lea.vmem %s2, %s234
      %p236 = scmp.lt.s32.totalorder %s15, 1
      %s237 = scalar_select %p236, %s15, 1
      %s238 = smul.addr %s237, 8
      %s239 = scalar_lea.vmem %s3, %s238
      %p240 = scmp.lt.s32.totalorder %s15, 1
      %s241 = scalar_select %p240, %s15, 1
      %s242 = smul.addr %s241, 8
      %s243 = scalar_lea.vmem %s4, %s242
      %v245 = vld [vmem:[%s227] sm:$0xff]
      %v246 = vmul.f32 %v245, 0.35355338
      %v247 = vpack.c.bf16 %v246, %v246
      %v248 = vld [vmem:[%s231] sm:$0xff]
      %v249 = vpack.c.bf16 %v248, %v248
      %v250 = vld [vmem:[%s235] sm:$0xff]
      %v251 = vpack.c.bf16 %v250, %v250
      %v252 = vld [vmem:[%s239] sm:$0xff]
      %vm253 = vcmask 64512
      %v255 = vsel %vm253, %v247, 0
      %v258 = vsel %vm253, %v249, 0
      %260 = vmatprep.subr.bf16.mxu0 0
      %261 = vmatpush1.bf16.xpose.msra.mxu0 0
      %262 = vmatprep.subr.bf16.mxu0 0
      %263 = vmatpush1.bf16.xpose.msra.mxu0 0
      %264 = vmatprep.subr.bf16.mxu0 0
      %265 = vmatpush1.bf16.xpose.msra.mxu0 0
      %266 = vmatprep.subr.bf16.mxu0 0
      %267 = vmatpush1.bf16.xpose.msra.mxu0 0
      %268 = vmatprep.subr.bf16.mxu0 0
      %269 = vmatpush1.bf16.xpose.msra.mxu0 0
      %270 = vmatprep.subr.bf16.mxu0 0
      %271 = vmatpush1.bf16.xpose.msra.mxu0 0
      %272 = vmatprep.subr.bf16.mxu0 0
      %273 = vmatpush1.bf16.xpose.msra.mxu0 0
      %274 = vmatprep.subr.bf16.mxu0 0
      %275 = vmatpush1.bf16.xpose.msra.mxu0 %v258
      %276 = vmatprep.subr.bf16.mxu0 0
      %277 = vmatpush2.bf16.xpose.msra.mxu0 0
      %278 = vmatprep.subr.bf16.mxu0 0
      %279 = vmatpush2.bf16.xpose.msra.mxu0 0
      %280 = vmatprep.subr.bf16.mxu0 0
      %281 = vmatpush2.bf16.xpose.msra.mxu0 0
      %282 = vmatprep.subr.bf16.mxu0 0
      %283 = vmatpush2.bf16.xpose.msra.mxu0 0
      %284 = vmatprep.subr.bf16.mxu0 0
      %285 = vmatpush2.bf16.xpose.msra.mxu0 0
      %286 = vmatprep.subr.bf16.mxu0 0
      %287 = vmatpush2.bf16.xpose.msra.mxu0 0
      %288 = vmatprep.subr.bf16.mxu0 0
      %289 = vmatpush2.bf16.xpose.msra.mxu0 0
      %290 = vmatprep.subr.bf16.mxu0 0
      %291 = vmatpush2.bf16.xpose.msra.mxu0 0
      %292 = vmatprep.mubr.bf16.mxu0 0
      %293 = vmatmul.mubr.bf16.gmra.mxu0 %v255
      %v294 = vpop.f32.mrf.mxu0
      %v295 = vadd.f32 %v252, %v294
      %v296 = vpop.f32.mrf.mxu0
      %v297 = vpop.f32.mrf.mxu0
      %v298 = vpop.f32.mrf.mxu0
      %299 = vdwg.mxu0
      %v300 = vsel %vm253, %v295, -inf
      %301 = vmax.xlane.f32.xlu0 %v300
      %v302 = vpop.xlane.xlu0 %301
      %v303 = vsub.f32 %v295, %v302
      %v304 = vmul.f32 %v303, 1.442695
      %v305 = vpow.pop %v304
      %v306 = vsel %vm253, %v305, 0.0
      %307 = vadd.xlane.f32.xlu0 %v306
      %v308 = vpop.xlane.xlu0 %307
      %v309 = vrcp.pop %v308
      %v310 = vmul.f32 %v305, %v309
      %v311 = vpack.c.bf16 %v310, %v310
      %v313 = vsel %vm253, %v311, 0
      %vm315 = vcmask 1043456
      %v317 = vsel %vm315, %v251, 0
      %319 = vmatprep.subr.bf16.mxu0 0
      %320 = vmatpush1.bf16.msra.mxu0 0
      %321 = vmatprep.subr.bf16.mxu0 0
      %322 = vmatpush1.bf16.msra.mxu0 0
      %323 = vmatprep.subr.bf16.mxu0 0
      %324 = vmatpush1.bf16.msra.mxu0 0
      %325 = vmatprep.subr.bf16.mxu0 0
      %326 = vmatpush1.bf16.msra.mxu0 0
      %327 = vmatprep.subr.bf16.mxu0 0
      %328 = vmatpush1.bf16.msra.mxu0 0
      %329 = vmatprep.subr.bf16.mxu0 0
      %330 = vmatpush1.bf16.msra.mxu0 0
      %331 = vmatprep.subr.bf16.mxu0 0
      %332 = vmatpush1.bf16.msra.mxu0 0
      %333 = vmatprep.subr.bf16.mxu0 0
      %334 = vmatpush1.bf16.msra.mxu0 %v317
      %335 = vmatprep.subr.bf16.mxu0 0
      %336 = vmatpush2.bf16.msra.mxu0 0
      %337 = vmatprep.subr.bf16.mxu0 0
      %338 = vmatpush2.bf16.msra.mxu0 0
      %339 = vmatprep.subr.bf16.mxu0 0
      %340 = vmatpush2.bf16.msra.mxu0 0
      %341 = vmatprep.subr.bf16.mxu0 0
      %342 = vmatpush2.bf16.msra.mxu0 0
      %343 = vmatprep.subr.bf16.mxu0 0
      %344 = vmatpush2.bf16.msra.mxu0 0
      %345 = vmatprep.subr.bf16.mxu0 0
      %346 = vmatpush2.bf16.msra.mxu0 0
      %347 = vmatprep.subr.bf16.mxu0 0
      %348 = vmatpush2.bf16.msra.mxu0 0
      %349 = vmatprep.subr.bf16.mxu0 0
      %350 = vmatpush2.bf16.msra.mxu0 0
      %351 = vmatprep.mubr.bf16.mxu0 0
      %352 = vmatmul.mubr.bf16.gmra.mxu0 %v313
      %v353 = vpop.f32.mrf.mxu0
      %v354 = vadd.f32 0.0, %v353
      %v355 = vpop.f32.mrf.mxu0
      %v356 = vpop.f32.mrf.mxu0
      %v357 = vpop.f32.mrf.mxu0
      %358 = vdwg.mxu0
      %360 = vrot.lane.b32.xlu0 %v247, 120
      %v361 = vpop.permute.xlu0 %360
      %363 = vrot.lane.b32.xlu0 %v249, 120
      %v364 = vpop.permute.xlu0 %363
      %v366 = vsel %vm253, %v361, 0
      %v369 = vsel %vm253, %v364, 0
      %371 = vmatprep.subr.bf16.mxu0 0
      %372 = vmatpush1.bf16.xpose.msra.mxu0 0
      %373 = vmatprep.subr.bf16.mxu0 0
      %374 = vmatpush1.bf16.xpose.msra.mxu0 0
      %375 = vmatprep.subr.bf16.mxu0 0
      %376 = vmatpush1.bf16.xpose.msra.mxu0 0
      %377 = vmatprep.subr.bf16.mxu0 0
      %378 = vmatpush1.bf16.xpose.msra.mxu0 0
      %379 = vmatprep.subr.bf16.mxu0 0
      %380 = vmatpush1.bf16.xpose.msra.mxu0 0
      %381 = vmatprep.subr.bf16.mxu0 0
      %382 = vmatpush1.bf16.xpose.msra.mxu0 0
      %383 = vmatprep.subr.bf16.mxu0 0
      %384 = vmatpush1.bf16.xpose.msra.mxu0 0
      %385 = vmatprep.subr.bf16.mxu0 0
      %386 = vmatpush1.bf16.xpose.msra.mxu0 %v369
      %387 = vmatprep.subr.bf16.mxu0 0
      %388 = vmatpush2.bf16.xpose.msra.mxu0 0
      %389 = vmatprep.subr.bf16.mxu0 0
      %390 = vmatpush2.bf16.xpose.msra.mxu0 0
      %391 = vmatprep.subr.bf16.mxu0 0
      %392 = vmatpush2.bf16.xpose.msra.mxu0 0
      %393 = vmatprep.subr.bf16.mxu0 0
      %394 = vmatpush2.bf16.xpose.msra.mxu0 0
      %395 = vmatprep.subr.bf16.mxu0 0
      %396 = vmatpush2.bf16.xpose.msra.mxu0 0
      %397 = vmatprep.subr.bf16.mxu0 0
      %398 = vmatpush2.bf16.xpose.msra.mxu0 0
      %399 = vmatprep.subr.bf16.mxu0 0
      %400 = vmatpush2.bf16.xpose.msra.mxu0 0
      %401 = vmatprep.subr.bf16.mxu0 0
      %402 = vmatpush2.bf16.xpose.msra.mxu0 0
      %403 = vmatprep.mubr.bf16.mxu0 0
      %404 = vmatmul.mubr.bf16.gmra.mxu0 %v366
      %v405 = vpop.f32.mrf.mxu0
      %v406 = vadd.f32 %v252, %v405
      %v407 = vpop.f32.mrf.mxu0
      %v408 = vpop.f32.mrf.mxu0
      %v409 = vpop.f32.mrf.mxu0
      %410 = vdwg.mxu0
      %v411 = vsel %vm253, %v406, -inf
      %412 = vmax.xlane.f32.xlu0 %v411
      %v413 = vpop.xlane.xlu0 %412
      %v414 = vsub.f32 %v406, %v413
      %v415 = vmul.f32 %v414, 1.442695
      %v416 = vpow.pop %v415
      %v417 = vsel %vm253, %v416, 0.0
      %418 = vadd.xlane.f32.xlu0 %v417
      %v419 = vpop.xlane.xlu0 %418
      %v420 = vrcp.pop %v419
      %v421 = vmul.f32 %v416, %v420
      %v422 = vpack.c.bf16 %v421, %v421
      %424 = vrot.lane.b32.xlu0 %v251, 120
      %v425 = vpop.permute.xlu0 %424
      %v427 = vsel %vm253, %v422, 0
      %v430 = vsel %vm315, %v425, 0
      %432 = vmatprep.subr.bf16.mxu0 0
      %433 = vmatpush1.bf16.msra.mxu0 0
      %434 = vmatprep.subr.bf16.mxu0 0
      %435 = vmatpush1.bf16.msra.mxu0 0
      %436 = vmatprep.subr.bf16.mxu0 0
      %437 = vmatpush1.bf16.msra.mxu0 0
      %438 = vmatprep.subr.bf16.mxu0 0
      %439 = vmatpush1.bf16.msra.mxu0 0
      %440 = vmatprep.subr.bf16.mxu0 0
      %441 = vmatpush1.bf16.msra.mxu0 0
      %442 = vmatprep.subr.bf16.mxu0 0
      %443 = vmatpush1.bf16.msra.mxu0 0
      %444 = vmatprep.subr.bf16.mxu0 0
      %445 = vmatpush1.bf16.msra.mxu0 0
      %446 = vmatprep.subr.bf16.mxu0 0
      %447 = vmatpush1.bf16.msra.mxu0 %v430
      %448 = vmatprep.subr.bf16.mxu0 0
      %449 = vmatpush2.bf16.msra.mxu0 0
      %450 = vmatprep.subr.bf16.mxu0 0
      %451 = vmatpush2.bf16.msra.mxu0 0
      %452 = vmatprep.subr.bf16.mxu0 0
      %453 = vmatpush2.bf16.msra.mxu0 0
      %454 = vmatprep.subr.bf16.mxu0 0
      %455 = vmatpush2.bf16.msra.mxu0 0
      %456 = vmatprep.subr.bf16.mxu0 0
      %457 = vmatpush2.bf16.msra.mxu0 0
      %458 = vmatprep.subr.bf16.mxu0 0
      %459 = vmatpush2.bf16.msra.mxu0 0
      %460 = vmatprep.subr.bf16.mxu0 0
      %461 = vmatpush2.bf16.msra.mxu0 0
      %462 = vmatprep.subr.bf16.mxu0 0
      %463 = vmatpush2.bf16.msra.mxu0 0
      %464 = vmatprep.mubr.bf16.mxu0 0
      %465 = vmatmul.mubr.bf16.gmra.mxu0 %v427
      %v466 = vpop.f32.mrf.mxu0
      %v467 = vadd.f32 0.0, %v466
      %v468 = vpop.f32.mrf.mxu0
      %v469 = vpop.f32.mrf.mxu0
      %v470 = vpop.f32.mrf.mxu0
      %471 = vdwg.mxu0
      %472 = vrot.lane.b32.xlu0 %v247, 112
      %v473 = vpop.permute.xlu0 %472
      %474 = vrot.lane.b32.xlu0 %v249, 112
      %v475 = vpop.permute.xlu0 %474
      %v477 = vsel %vm253, %v473, 0
      %v480 = vsel %vm253, %v475, 0
      %482 = vmatprep.subr.bf16.mxu0 0
      %483 = vmatpush1.bf16.xpose.msra.mxu0 0
      %484 = vmatprep.subr.bf16.mxu0 0
      %485 = vmatpush1.bf16.xpose.msra.mxu0 0
      %486 = vmatprep.subr.bf16.mxu0 0
      %487 = vmatpush1.bf16.xpose.msra.mxu0 0
      %488 = vmatprep.subr.bf16.mxu0 0
      %489 = vmatpush1.bf16.xpose.msra.mxu0 0
      %490 = vmatprep.subr.bf16.mxu0 0
      %491 = vmatpush1.bf16.xpose.msra.mxu0 0
      %492 = vmatprep.subr.bf16.mxu0 0
      %493 = vmatpush1.bf16.xpose.msra.mxu0 0
      %494 = vmatprep.subr.bf16.mxu0 0
      %495 = vmatpush1.bf16.xpose.msra.mxu0 0
      %496 = vmatprep.subr.bf16.mxu0 0
      %497 = vmatpush1.bf16.xpose.msra.mxu0 %v480
      %498 = vmatprep.subr.bf16.mxu0 0
      %499 = vmatpush2.bf16.xpose.msra.mxu0 0
      %500 = vmatprep.subr.bf16.mxu0 0
      %501 = vmatpush2.bf16.xpose.msra.mxu0 0
      %502 = vmatprep.subr.bf16.mxu0 0
      %503 = vmatpush2.bf16.xpose.msra.mxu0 0
      %504 = vmatprep.subr.bf16.mxu0 0
      %505 = vmatpush2.bf16.xpose.msra.mxu0 0
      %506 = vmatprep.subr.bf16.mxu0 0
      %507 = vmatpush2.bf16.xpose.msra.mxu0 0
      %508 = vmatprep.subr.bf16.mxu0 0
      %509 = vmatpush2.bf16.xpose.msra.mxu0 0
      %510 = vmatprep.subr.bf16.mxu0 0
      %511 = vmatpush2.bf16.xpose.msra.mxu0 0
      %512 = vmatprep.subr.bf16.mxu0 0
      %513 = vmatpush2.bf16.xpose.msra.mxu0 0
      %514 = vmatprep.mubr.bf16.mxu0 0
      %515 = vmatmul.mubr.bf16.gmra.mxu0 %v477
      %v516 = vpop.f32.mrf.mxu0
      %v517 = vadd.f32 %v252, %v516
      %v518 = vpop.f32.mrf.mxu0
      %v519 = vpop.f32.mrf.mxu0
      %v520 = vpop.f32.mrf.mxu0
      %521 = vdwg.mxu0
      %v522 = vsel %vm253, %v517, -inf
      %523 = vmax.xlane.f32.xlu0 %v522
      %v524 = vpop.xlane.xlu0 %523
      %v525 = vsub.f32 %v517, %v524
      %v526 = vmul.f32 %v525, 1.442695
      %v527 = vpow.pop %v526
      %v528 = vsel %vm253, %v527, 0.0
      %529 = vadd.xlane.f32.xlu0 %v528
      %v530 = vpop.xlane.xlu0 %529
      %v531 = vrcp.pop %v530
      %v532 = vmul.f32 %v527, %v531
      %v533 = vpack.c.bf16 %v532, %v532
      %534 = vrot.lane.b32.xlu0 %v251, 112
      %v535 = vpop.permute.xlu0 %534
      %v537 = vsel %vm253, %v533, 0
      %v540 = vsel %vm315, %v535, 0
      %542 = vmatprep.subr.bf16.mxu0 0
      %543 = vmatpush1.bf16.msra.mxu0 0
      %544 = vmatprep.subr.bf16.mxu0 0
      %545 = vmatpush1.bf16.msra.mxu0 0
      %546 = vmatprep.subr.bf16.mxu0 0
      %547 = vmatpush1.bf16.msra.mxu0 0
      %548 = vmatprep.subr.bf16.mxu0 0
      %549 = vmatpush1.bf16.msra.mxu0 0
      %550 = vmatprep.subr.bf16.mxu0 0
      %551 = vmatpush1.bf16.msra.mxu0 0
      %552 = vmatprep.subr.bf16.mxu0 0
      %553 = vmatpush1.bf16.msra.mxu0 0
      %554 = vmatprep.subr.bf16.mxu0 0
      %555 = vmatpush1.bf16.msra.mxu0 0
      %556 = vmatprep.subr.bf16.mxu0 0
      %557 = vmatpush1.bf16.msra.mxu0 %v540
      %558 = vmatprep.subr.bf16.mxu0 0
      %559 = vmatpush2.bf16.msra.mxu0 0
      %560 = vmatprep.subr.bf16.mxu0 0
      %561 = vmatpush2.bf16.msra.mxu0 0
      %562 = vmatprep.subr.bf16.mxu0 0
      %563 = vmatpush2.bf16.msra.mxu0 0
      %564 = vmatprep.subr.bf16.mxu0 0
      %565 = vmatpush2.bf16.msra.mxu0 0
      %566 = vmatprep.subr.bf16.mxu0 0
      %567 = vmatpush2.bf16.msra.mxu0 0
      %568 = vmatprep.subr.bf16.mxu0 0
      %569 = vmatpush2.bf16.msra.mxu0 0
      %570 = vmatprep.subr.bf16.mxu0 0
      %571 = vmatpush2.bf16.msra.mxu0 0
      %572 = vmatprep.subr.bf16.mxu0 0
      %573 = vmatpush2.bf16.msra.mxu0 0
      %574 = vmatprep.mubr.bf16.mxu0 0
      %575 = vmatmul.mubr.bf16.gmra.mxu0 %v537
      %v576 = vpop.f32.mrf.mxu0
      %v577 = vadd.f32 0.0, %v576
      %v578 = vpop.f32.mrf.mxu0
      %v579 = vpop.f32.mrf.mxu0
      %v580 = vpop.f32.mrf.mxu0
      %581 = vdwg.mxu0
      %582 = vrot.lane.b32.xlu0 %v247, 104
      %v583 = vpop.permute.xlu0 %582
      %584 = vrot.lane.b32.xlu0 %v249, 104
      %v585 = vpop.permute.xlu0 %584
      %v587 = vsel %vm253, %v583, 0
      %v590 = vsel %vm253, %v585, 0
      %592 = vmatprep.subr.bf16.mxu0 0
      %593 = vmatpush1.bf16.xpose.msra.mxu0 0
      %594 = vmatprep.subr.bf16.mxu0 0
      %595 = vmatpush1.bf16.xpose.msra.mxu0 0
      %596 = vmatprep.subr.bf16.mxu0 0
      %597 = vmatpush1.bf16.xpose.msra.mxu0 0
      %598 = vmatprep.subr.bf16.mxu0 0
      %599 = vmatpush1.bf16.xpose.msra.mxu0 0
      %600 = vmatprep.subr.bf16.mxu0 0
      %601 = vmatpush1.bf16.xpose.msra.mxu0 0
      %602 = vmatprep.subr.bf16.mxu0 0
      %603 = vmatpush1.bf16.xpose.msra.mxu0 0
      %604 = vmatprep.subr.bf16.mxu0 0
      %605 = vmatpush1.bf16.xpose.msra.mxu0 0
      %606 = vmatprep.subr.bf16.mxu0 0
      %607 = vmatpush1.bf16.xpose.msra.mxu0 %v590
      %608 = vmatprep.subr.bf16.mxu0 0
      %609 = vmatpush2.bf16.xpose.msra.mxu0 0
      %610 = vmatprep.subr.bf16.mxu0 0
      %611 = vmatpush2.bf16.xpose.msra.mxu0 0
      %612 = vmatprep.subr.bf16.mxu0 0
      %613 = vmatpush2.bf16.xpose.msra.mxu0 0
      %614 = vmatprep.subr.bf16.mxu0 0
      %615 = vmatpush2.bf16.xpose.msra.mxu0 0
      %616 = vmatprep.subr.bf16.mxu0 0
      %617 = vmatpush2.bf16.xpose.msra.mxu0 0
      %618 = vmatprep.subr.bf16.mxu0 0
      %619 = vmatpush2.bf16.xpose.msra.mxu0 0
      %620 = vmatprep.subr.bf16.mxu0 0
      %621 = vmatpush2.bf16.xpose.msra.mxu0 0
      %622 = vmatprep.subr.bf16.mxu0 0
      %623 = vmatpush2.bf16.xpose.msra.mxu0 0
      %624 = vmatprep.mubr.bf16.mxu0 0
      %625 = vmatmul.mubr.bf16.gmra.mxu0 %v587
      %v626 = vpop.f32.mrf.mxu0
      %v627 = vadd.f32 %v252, %v626
      %v628 = vpop.f32.mrf.mxu0
      %v629 = vpop.f32.mrf.mxu0
      %v630 = vpop.f32.mrf.mxu0
      %631 = vdwg.mxu0
      %v632 = vsel %vm253, %v627, -inf
      %633 = vmax.xlane.f32.xlu0 %v632
      %v634 = vpop.xlane.xlu0 %633
      %v635 = vsub.f32 %v627, %v634
      %v636 = vmul.f32 %v635, 1.442695
      %v637 = vpow.pop %v636
      %v638 = vsel %vm253, %v637, 0.0
      %639 = vadd.xlane.f32.xlu0 %v638
      %v640 = vpop.xlane.xlu0 %639
      %v641 = vrcp.pop %v640
      %v642 = vmul.f32 %v637, %v641
      %v643 = vpack.c.bf16 %v642, %v642
      %644 = vrot.lane.b32.xlu0 %v251, 104
      %v645 = vpop.permute.xlu0 %644
      %v647 = vsel %vm253, %v643, 0
      %v650 = vsel %vm315, %v645, 0
      %652 = vmatprep.subr.bf16.mxu0 0
      %653 = vmatpush1.bf16.msra.mxu0 0
      %654 = vmatprep.subr.bf16.mxu0 0
      %655 = vmatpush1.bf16.msra.mxu0 0
      %656 = vmatprep.subr.bf16.mxu0 0
      %657 = vmatpush1.bf16.msra.mxu0 0
      %658 = vmatprep.subr.bf16.mxu0 0
      %659 = vmatpush1.bf16.msra.mxu0 0
      %660 = vmatprep.subr.bf16.mxu0 0
      %661 = vmatpush1.bf16.msra.mxu0 0
      %662 = vmatprep.subr.bf16.mxu0 0
      %663 = vmatpush1.bf16.msra.mxu0 0
      %664 = vmatprep.subr.bf16.mxu0 0
      %665 = vmatpush1.bf16.msra.mxu0 0
      %666 = vmatprep.subr.bf16.mxu0 0
      %667 = vmatpush1.bf16.msra.mxu0 %v650
      %668 = vmatprep.subr.bf16.mxu0 0
      %669 = vmatpush2.bf16.msra.mxu0 0
      %670 = vmatprep.subr.bf16.mxu0 0
      %671 = vmatpush2.bf16.msra.mxu0 0
      %672 = vmatprep.subr.bf16.mxu0 0
      %673 = vmatpush2.bf16.msra.mxu0 0
      %674 = vmatprep.subr.bf16.mxu0 0
      %675 = vmatpush2.bf16.msra.mxu0 0
      %676 = vmatprep.subr.bf16.mxu0 0
      %677 = vmatpush2.bf16.msra.mxu0 0
      %678 = vmatprep.subr.bf16.mxu0 0
      %679 = vmatpush2.bf16.msra.mxu0 0
      %680 = vmatprep.subr.bf16.mxu0 0
      %681 = vmatpush2.bf16.msra.mxu0 0
      %682 = vmatprep.subr.bf16.mxu0 0
      %683 = vmatpush2.bf16.msra.mxu0 0
      %684 = vmatprep.mubr.bf16.mxu0 0
      %685 = vmatmul.mubr.bf16.gmra.mxu0 %v647
      %v686 = vpop.f32.mrf.mxu0
      %v687 = vadd.f32 0.0, %v686
      %v688 = vpop.f32.mrf.mxu0
      %v689 = vpop.f32.mrf.mxu0
      %v690 = vpop.f32.mrf.mxu0
      %691 = vdwg.mxu0
      %693 = vrot.lane.b32.xlu0 %v467, 8
      %v694 = vpop.permute.xlu0 %693
      %697 = vrot.lane.b32.xlu0 %v577, 16
      %v698 = vpop.permute.xlu0 %697
      %701 = vrot.lane.b32.xlu0 %v687, 24
      %v702 = vpop.permute.xlu0 %701
      %v704 = vsel %vm253, %v354, %v694
      %vm705 = vcmask 130048
      %v706 = vsel %vm705, %v704, %v698
      %vm707 = vcmask 195584
      %v708 = vsel %vm707, %v706, %v702
      %vm709 = vcmask 261120
      %710 = vst.msk [vmem:[%s243] sm:$0xff] %vm709, %v708
      %p711 = scmp.lt.s32.totalorder %s15, 1
      %s712 = scalar_select %p711, %s15, 1
      %s713 = smul.addr %s712, 8
      %s714 = scalar_lea.vmem %s4, %s713
      // Predicated region
      $region37: #{_lambda_.33} parent=35 // pred_check
        %p715 = pneg %p137
      $region38: #{_lambda_.33} parent=35 // pred_check_branch
        %717 = sbr.rel (%p715) target = $region40
      $region39: #{_lambda_.33} parent=35 // pred_region
        _
      $region40: #{_lambda_.33} parent=35 // pred_fallthru
        _
    $region36: #{_lambda_.33} parent=5 // pred_fallthru
      _
    %p718 = scmp.le.s32.totalorder 2, %s10
    // Predicated region
    $region41: #{_lambda_.33} parent=5 // pred_check
      %p719 = pneg %p718
    $region42: #{_lambda_.33} parent=5 // pred_check_branch
      %721 = sbr.rel (%p719) target = $region44
    $region43: #{_lambda_.33} parent=5 // pred_region
      %s722 = ssub.s32 %s10, 2
      // Predicated region
      $region45: #{_lambda_.33} parent=43 // pred_check
        %p723 = pneg %p143
      $region46: #{_lambda_.33} parent=43 // pred_check_branch
        %725 = sbr.rel (%p723) target = $region48
      $region47: #{_lambda_.33} parent=43 // pred_region
        %p726 = scmp.lt.s32.totalorder %s16, 1
        %s727 = scalar_select %p726, %s16, 1
        %s728 = smul.addr %s727, 8
        %s729 = scalar_lea.vmem %s4, %s728
      $region48: #{_lambda_.33} parent=43 // pred_fallthru
        _
    $region44: #{_lambda_.33} parent=5 // pred_fallthru
      _
  $region6: #{_lambda_.33} parent=0 // loop_footer
    %s14 = sadd.s32 1, %s10
  $region7: #{_lambda_.33} parent=0 // loop_footer_branch
    %9 = sbr.rel target = $region3
  $region8: #{_lambda_.33} parent=0 // loop_exit
    _

// kernel: _lambda_.36
$region0: #{_lambda_.36}
  #allocation0 [shape = 'u32[]', space=smem, size = 0x4, offset = 0x4, fixed_abs, tag = 'smem constant byte address 0x4 - core index']
  #allocation1 [shape = 'u32[144,128]{1,0:T(1,128)}', space=vmem, size = 0x12000, scoped, tag = 'internal scratch']
  #allocation2 [shape = 'f32[16,64]{1,0:T(8,128)}', space=vmem, size = 0x2000, scoped, tag = 'scratch operand']
  %s0 = inlined_call_operand.vmem [shape: f32[16,32], index: 0, kind: input, shape index: {}]
  %s1 = inlined_call_operand.vmem [shape: bf16[32,64], index: 1, kind: input, shape index: {}]
  %s2 = inlined_call_operand.vmem [shape: f32[1,64], index: 2, kind: input, shape index: {}]
  %s3 = inlined_call_operand.vmem [shape: f32[16,64], index: 3, kind: output, shape index: {}]
  %s4 = sld [smem:[#allocation0]]
  $region30: #{_lambda_.36} parent=0
    _
  %s6 = ssub.s32 1, %s4
  %s7 = scalar_select 0, %s6, %s4
  // Predicated region
  $region2: #{_lambda_.36} parent=0 // pred_check
    _
  $region3: #{_lambda_.36} parent=0 // pred_check_branch
    %9 = sbr.rel (0) target = $region5
  $region4: #{_lambda_.36} parent=0 // pred_region
    _
  $region5: #{_lambda_.36} parent=0 // pred_fallthru
    _
  // Predicated region
  $region6: #{_lambda_.36} parent=0 // pred_check
    _
  $region7: #{_lambda_.36} parent=0 // pred_check_branch
    %11 = sbr.rel (0) target = $region9
  $region8: #{_lambda_.36} parent=0 // pred_region
    _
  $region9: #{_lambda_.36} parent=0 // pred_fallthru
    _
  // Predicated region
  $region10: #{_lambda_.36} parent=0 // pred_check
    _
  $region11: #{_lambda_.36} parent=0 // pred_check_branch
    %13 = sbr.rel (0) target = $region13
  $region12: #{_lambda_.36} parent=0 // pred_region
    _
  $region13: #{_lambda_.36} parent=0 // pred_fallthru
    _
  %p15 = scmp.eq.s32.totalorder 0, 0
  // Predicated region
  $region14: #{_lambda_.36} parent=0 // pred_check
    %p16 = pneg %p15
  $region15: #{_lambda_.36} parent=0 // pred_check_branch
    %18 = sbr.rel (%p16) target = $region17
  $region16: #{_lambda_.36} parent=0 // pred_region
    %vm19 = vcmask 523264
    %20 = vst.msk [vmem:[#allocation2] sm:$0xff] %vm19, 0.0
    %21 = vst.msk [vmem:[#allocation2 + $0x8] sm:$0xff] %vm19, 0.0
  $region17: #{_lambda_.36} parent=0 // pred_fallthru
    _
  %v22 = vld [vmem:[#allocation2] sm:$0xff]
  %v23 = vld [vmem:[#allocation2 + $0x8] sm:$0xff]
  %v24 = vld [vmem:[%s0] sm:$0xff]
  %v25 = vld [vmem:[%s0 + $0x8] sm:$0xff]
  %v26 = vpack.c.bf16 %v25, %v24
  %v27 = vld [vmem:[%s1] sm:$0xf]
  %v28 = vld [vmem:[%s1 + $0x4] sm:$0xf]
  %v29 = vld [vmem:[%s1 + $0x8] sm:$0xf]
  %v30 = vld [vmem:[%s1 + $0xc] sm:$0xf]
  %v35 = vunpack.c.l.b16 %v27
  %v36 = vunpack.c.l.b16 %v28
  %v37 = vunpack.c.l.b16 %v29
  %v38 = vunpack.c.l.b16 %v30
  %v39 = vpack.c.b16 %v36, %v35
  %v40 = vpack.c.b16 %v38, %v37
  %vm43 = vcmask 261120
  %v45 = vsel %vm43, %v26, 0
  %47 = vmatprep.subr.bf16.mxu0 0
  %48 = vmatpush1.bf16.msra.mxu0 0
  %49 = vmatprep.subr.bf16.mxu0 0
  %50 = vmatpush1.bf16.msra.mxu0 0
  %51 = vmatprep.subr.bf16.mxu0 0
  %52 = vmatpush1.bf16.msra.mxu0 0
  %53 = vmatprep.subr.bf16.mxu0 0
  %54 = vmatpush1.bf16.msra.mxu0 0
  %55 = vmatprep.subr.bf16.mxu0 0
  %56 = vmatpush1.bf16.msra.mxu0 0
  %57 = vmatprep.subr.bf16.mxu0 0
  %58 = vmatpush1.bf16.msra.mxu0 0
  %59 = vmatprep.subr.bf16.mxu0 0
  %60 = vmatpush1.bf16.msra.mxu0 %v40
  %61 = vmatprep.subr.bf16.mxu0 0
  %62 = vmatpush1.bf16.msra.mxu0 %v39
  %63 = vmatprep.subr.bf16.mxu0 0
  %64 = vmatpush2.bf16.msra.mxu0 0
  %65 = vmatprep.subr.bf16.mxu0 0
  %66 = vmatpush2.bf16.msra.mxu0 0
  %67 = vmatprep.subr.bf16.mxu0 0
  %68 = vmatpush2.bf16.msra.mxu0 0
  %69 = vmatprep.subr.bf16.mxu0 0
  %70 = vmatpush2.bf16.msra.mxu0 0
  %71 = vmatprep.subr.bf16.mxu0 0
  %72 = vmatpush2.bf16.msra.mxu0 0
  %73 = vmatprep.subr.bf16.mxu0 0
  %74 = vmatpush2.bf16.msra.mxu0 0
  %75 = vmatprep.subr.bf16.mxu0 0
  %76 = vmatpush2.bf16.msra.mxu0 0
  %77 = vmatprep.subr.bf16.mxu0 0
  %78 = vmatpush2.bf16.msra.mxu0 0
  %79 = vmatprep.mubr.bf16.mxu0 0
  %80 = vmatmul.mubr.bf16.gmra.mxu0 %v45
  %v81 = vpop.f32.mrf.mxu0
  %v82 = vadd.f32 0.0, %v81
  %v83 = vpop.f32.mrf.mxu0
  %v84 = vpop.f32.mrf.mxu0
  %v85 = vadd.f32 0.0, %v84
  %v86 = vpop.f32.mrf.mxu0
  %87 = vdwg.mxu0
  %v88 = vadd.f32 %v22, %v82
  %v89 = vadd.f32 %v23, %v85
  %vm90 = vcmask 523264
  %91 = vst.msk [vmem:[#allocation2] sm:$0xff] %vm90, %v88
  %92 = vst.msk [vmem:[#allocation2 + $0x8] sm:$0xff] %vm90, %v89
  // Predicated region
  $region18: #{_lambda_.36} parent=0 // pred_check
    %p93 = pneg %p15
  $region19: #{_lambda_.36} parent=0 // pred_check_branch
    %95 = sbr.rel (%p93) target = $region21
  $region20: #{_lambda_.36} parent=0 // pred_region
    %v96 = vld [vmem:[#allocation2] sm:$0xff]
    %v97 = vld [vmem:[#allocation2 + $0x8] sm:$0xff]
    %v98 = vld [vmem:[%s2] sm:$0x1]
    %v100 = vlaneseq
    %v101 = vshrl.u32 %v100, 7
    %v102 = vsub.s32 0, %v101
    %v103 = vrot.slane %v98, %v102
    %v105 = vadd.f32 %v96, %v103
    %v106 = vadd.f32 %v97, %v103
    %107 = vst.msk [vmem:[%s3] sm:$0xff] %vm90, %v105
    %108 = vst.msk [vmem:[%s3 + $0x8] sm:$0xff] %vm90, %v106
  $region21: #{_lambda_.36} parent=0 // pred_fallthru
    _
  // Predicated region
  $region22: #{_lambda_.36} parent=0 // pred_check
    _
  $region23: #{_lambda_.36} parent=0 // pred_check_branch
    %110 = sbr.rel (0) target = $region25
  $region24: #{_lambda_.36} parent=0 // pred_region
    _
  $region25: #{_lambda_.36} parent=0 // pred_fallthru
    _
  // Predicated region
  $region26: #{_lambda_.36} parent=0 // pred_check
    _
  $region27: #{_lambda_.36} parent=0 // pred_check_branch
    %112 = sbr.rel (0) target = $region29
  $region28: #{_lambda_.36} parent=0 // pred_region
    _
  $region29: #{_lambda_.36} parent=0 // pred_fallthru
    _

// kernel: _lambda_.27
$region0: #{_lambda_.27}
  #allocation0 [shape = 'u32[]', space=smem, size = 0x4, offset = 0x4, fixed_abs, tag = 'smem constant byte address 0x4 - core index']
  #allocation1 [shape = 'u32[144,128]{1,0:T(1,128)}', space=vmem, size = 0x12000, scoped, tag = 'internal scratch']
  %s0 = inlined_call_operand.vmem [shape: f32[16,32], index: 0, kind: input, shape index: {}]
  %s1 = inlined_call_operand.vmem [shape: bf16[32,64], index: 1, kind: input, shape index: {}]
  %s2 = inlined_call_operand.vmem [shape: f32[1,64], index: 2, kind: input, shape index: {}]
  %s3 = inlined_call_operand.vmem [shape: bf16[64,32], index: 3, kind: input, shape index: {}]
  %s4 = inlined_call_operand.vmem [shape: f32[1,32], index: 4, kind: input, shape index: {}]
  %s5 = inlined_call_operand.vmem [shape: f32[1,32], index: 5, kind: input, shape index: {}]
  %s6 = inlined_call_operand.vmem [shape: f32[1,32], index: 6, kind: input, shape index: {}]
  %s7 = inlined_call_operand.vmem [shape: f32[16,32], index: 7, kind: output, shape index: {}]
  %s8 = sld [smem:[#allocation0]]
  $region38: #{_lambda_.27} parent=0
    _
  %s10 = ssub.s32 1, %s8
  %s11 = scalar_select 0, %s10, %s8
  // Predicated region
  $region2: #{_lambda_.27} parent=0 // pred_check
    _
  $region3: #{_lambda_.27} parent=0 // pred_check_branch
    %13 = sbr.rel (0) target = $region5
  $region4: #{_lambda_.27} parent=0 // pred_region
    _
  $region5: #{_lambda_.27} parent=0 // pred_fallthru
    _
  // Predicated region
  $region6: #{_lambda_.27} parent=0 // pred_check
    _
  $region7: #{_lambda_.27} parent=0 // pred_check_branch
    %15 = sbr.rel (0) target = $region9
  $region8: #{_lambda_.27} parent=0 // pred_region
    _
  $region9: #{_lambda_.27} parent=0 // pred_fallthru
    _
  // Predicated region
  $region10: #{_lambda_.27} parent=0 // pred_check
    _
  $region11: #{_lambda_.27} parent=0 // pred_check_branch
    %17 = sbr.rel (0) target = $region13
  $region12: #{_lambda_.27} parent=0 // pred_region
    _
  $region13: #{_lambda_.27} parent=0 // pred_fallthru
    _
  // Predicated region
  $region14: #{_lambda_.27} parent=0 // pred_check
    _
  $region15: #{_lambda_.27} parent=0 // pred_check_branch
    %19 = sbr.rel (0) target = $region17
  $region16: #{_lambda_.27} parent=0 // pred_region
    _
  $region17: #{_lambda_.27} parent=0 // pred_fallthru
    _
  // Predicated region
  $region18: #{_lambda_.27} parent=0 // pred_check
    _
  $region19: #{_lambda_.27} parent=0 // pred_check_branch
    %21 = sbr.rel (0) target = $region21
  $region20: #{_lambda_.27} parent=0 // pred_region
    _
  $region21: #{_lambda_.27} parent=0 // pred_fallthru
    _
  // Predicated region
  $region22: #{_lambda_.27} parent=0 // pred_check
    _
  $region23: #{_lambda_.27} parent=0 // pred_check_branch
    %23 = sbr.rel (0) target = $region25
  $region24: #{_lambda_.27} parent=0 // pred_region
    _
  $region25: #{_lambda_.27} parent=0 // pred_fallthru
    _
  // Predicated region
  $region26: #{_lambda_.27} parent=0 // pred_check
    _
  $region27: #{_lambda_.27} parent=0 // pred_check_branch
    %25 = sbr.rel (0) target = $region29
  $region28: #{_lambda_.27} parent=0 // pred_region
    _
  $region29: #{_lambda_.27} parent=0 // pred_fallthru
    _
  %v27 = vld [vmem:[%s0] sm:$0xff]
  %v28 = vld [vmem:[%s0 + $0x8] sm:$0xff]
  %v29 = vpack.c.bf16 %v28, %v27
  %v30 = vld [vmem:[%s1] sm:$0xf]
  %v31 = vld [vmem:[%s1 + $0x4] sm:$0xf]
  %v32 = vld [vmem:[%s1 + $0x8] sm:$0xf]
  %v33 = vld [vmem:[%s1 + $0xc] sm:$0xf]
  %v34 = vld [vmem:[%s2] sm:$0x1]
  %v36 = vlaneseq
  %v37 = vshrl.u32 %v36, 7
  %v38 = vsub.s32 0, %v37
  %v39 = vrot.slane %v34, %v38
  %v45 = vunpack.c.l.b16 %v30
  %v46 = vunpack.c.l.b16 %v31
  %v47 = vunpack.c.l.b16 %v32
  %v48 = vunpack.c.l.b16 %v33
  %v49 = vpack.c.b16 %v46, %v45
  %v50 = vpack.c.b16 %v48, %v47
  %vm53 = vcmask 261120
  %v55 = vsel %vm53, %v29, 0
  %57 = vmatprep.subr.bf16.mxu0 0
  %58 = vmatpush1.bf16.msra.mxu0 0
  %59 = vmatprep.subr.bf16.mxu0 0
  %60 = vmatpush1.bf16.msra.mxu0 0
  %61 = vmatprep.subr.bf16.mxu0 0
  %62 = vmatpush1.bf16.msra.mxu0 0
  %63 = vmatprep.subr.bf16.mxu0 0
  %64 = vmatpush1.bf16.msra.mxu0 0
  %65 = vmatprep.subr.bf16.mxu0 0
  %66 = vmatpush1.bf16.msra.mxu0 0
  %67 = vmatprep.subr.bf16.mxu0 0
  %68 = vmatpush1.bf16.msra.mxu0 0
  %69 = vmatprep.subr.bf16.mxu0 0
  %70 = vmatpush1.bf16.msra.mxu0 %v50
  %71 = vmatprep.subr.bf16.mxu0 0
  %72 = vmatpush1.bf16.msra.mxu0 %v49
  %73 = vmatprep.subr.bf16.mxu0 0
  %74 = vmatpush2.bf16.msra.mxu0 0
  %75 = vmatprep.subr.bf16.mxu0 0
  %76 = vmatpush2.bf16.msra.mxu0 0
  %77 = vmatprep.subr.bf16.mxu0 0
  %78 = vmatpush2.bf16.msra.mxu0 0
  %79 = vmatprep.subr.bf16.mxu0 0
  %80 = vmatpush2.bf16.msra.mxu0 0
  %81 = vmatprep.subr.bf16.mxu0 0
  %82 = vmatpush2.bf16.msra.mxu0 0
  %83 = vmatprep.subr.bf16.mxu0 0
  %84 = vmatpush2.bf16.msra.mxu0 0
  %85 = vmatprep.subr.bf16.mxu0 0
  %86 = vmatpush2.bf16.msra.mxu0 0
  %87 = vmatprep.subr.bf16.mxu0 0
  %88 = vmatpush2.bf16.msra.mxu0 0
  %89 = vmatprep.mubr.bf16.mxu0 0
  %90 = vmatmul.mubr.bf16.gmra.mxu0 %v55
  %v91 = vpop.f32.mrf.mxu0
  %v92 = vadd.f32 %v39, %v91
  %v93 = vpop.f32.mrf.mxu0
  %v94 = vpop.f32.mrf.mxu0
  %v95 = vadd.f32 %v39, %v94
  %v96 = vpop.f32.mrf.mxu0
  %97 = vdwg.mxu0
  %v98 = vmax.f32 %v92, 0.0
  %v99 = vmax.f32 %v95, 0.0
  %v100 = vpack.c.bf16 %v99, %v98
  %v101 = vld [vmem:[%s3] sm:$0xf]
  %v102 = vld [vmem:[%s3 + $0x4] sm:$0xf]
  %v103 = vld [vmem:[%s3 + $0x8] sm:$0xf]
  %v104 = vld [vmem:[%s3 + $0xc] sm:$0xf]
  %v105 = vld [vmem:[%s3 + $0x10] sm:$0xf]
  %v106 = vld [vmem:[%s3 + $0x14] sm:$0xf]
  %v107 = vld [vmem:[%s3 + $0x18] sm:$0xf]
  %v108 = vld [vmem:[%s3 + $0x1c] sm:$0xf]
  %v109 = vld [vmem:[%s4] sm:$0x1]
  %v111 = vlaneseq
  %v112 = vshrl.u32 %v111, 7
  %v113 = vsub.s32 0, %v112
  %v114 = vrot.slane %v109, %v113
  %v124 = vunpack.c.l.b16 %v101
  %v125 = vunpack.c.l.b16 %v102
  %v126 = vunpack.c.l.b16 %v103
  %v127 = vunpack.c.l.b16 %v104
  %v128 = vunpack.c.l.b16 %v105
  %v129 = vunpack.c.l.b16 %v106
  %v130 = vunpack.c.l.b16 %v107
  %v131 = vunpack.c.l.b16 %v108
  %v132 = vpack.c.b16 %v125, %v124
  %v133 = vpack.c.b16 %v127, %v126
  %v134 = vpack.c.b16 %v129, %v128
  %v135 = vpack.c.b16 %v131, %v130
  %vm140 = vcmask 523264
  %v142 = vsel %vm140, %v100, 0
  %144 = vmatprep.subr.bf16.mxu0 0
  %145 = vmatpush1.bf16.msra.mxu0 0
  %146 = vmatprep.subr.bf16.mxu0 0
  %147 = vmatpush1.bf16.msra.mxu0 0
  %148 = vmatprep.subr.bf16.mxu0 0
  %149 = vmatpush1.bf16.msra.mxu0 0
  %150 = vmatprep.subr.bf16.mxu0 0
  %151 = vmatpush1.bf16.msra.mxu0 0
  %152 = vmatprep.subr.bf16.mxu0 0
  %153 = vmatpush1.bf16.msra.mxu0 %v135
  %154 = vmatprep.subr.bf16.mxu0 0
  %155 = vmatpush1.bf16.msra.mxu0 %v134
  %156 = vmatprep.subr.bf16.mxu0 0
  %157 = vmatpush1.bf16.msra.mxu0 %v133
  %158 = vmatprep.subr.bf16.mxu0 0
  %159 = vmatpush1.bf16.msra.mxu0 %v132
  %160 = vmatprep.subr.bf16.mxu0 0
  %161 = vmatpush2.bf16.msra.mxu0 0
  %162 = vmatprep.subr.bf16.mxu0 0
  %163 = vmatpush2.bf16.msra.mxu0 0
  %164 = vmatprep.subr.bf16.mxu0 0
  %165 = vmatpush2.bf16.msra.mxu0 0
  %166 = vmatprep.subr.bf16.mxu0 0
  %167 = vmatpush2.bf16.msra.mxu0 0
  %168 = vmatprep.subr.bf16.mxu0 0
  %169 = vmatpush2.bf16.msra.mxu0 0
  %170 = vmatprep.subr.bf16.mxu0 0
  %171 = vmatpush2.bf16.msra.mxu0 0
  %172 = vmatprep.subr.bf16.mxu0 0
  %173 = vmatpush2.bf16.msra.mxu0 0
  %174 = vmatprep.subr.bf16.mxu0 0
  %175 = vmatpush2.bf16.msra.mxu0 0
  %176 = vmatprep.mubr.bf16.mxu0 0
  %177 = vmatmul.mubr.bf16.gmra.mxu0 %v142
  %v178 = vpop.f32.mrf.mxu0
  %v179 = vadd.f32 %v114, %v178
  %v180 = vpop.f32.mrf.mxu0
  %v181 = vpop.f32.mrf.mxu0
  %v182 = vadd.f32 %v114, %v181
  %v183 = vpop.f32.mrf.mxu0
  %184 = vdwg.mxu0
  %v185 = vadd.f32 %v27, %v179
  %v186 = vadd.f32 %v28, %v182
  %v187 = vsel %vm53, %v185, 0.0
  %188 = vadd.xlane.f32.xlu0 %v187
  %v189 = vpop.xlane.xlu0 %188
  %v190 = vsel %vm53, %v186, 0.0
  %191 = vadd.xlane.f32.xlu0 %v190
  %v192 = vpop.xlane.xlu0 %191
  %v193 = vrcp.pop 32.0
  %v194 = vmul.f32 %v189, %v193
  %v195 = vmul.f32 %v192, %v193
  %v196 = vsub.f32 %v185, %v194
  %v197 = vsub.f32 %v186, %v195
  %v198 = vmul.f32 %v196, %v196
  %v199 = vmul.f32 %v197, %v197
  %v200 = vsel %vm53, %v198, 0.0
  %201 = vadd.xlane.f32.xlu0 %v200
  %v202 = vpop.xlane.xlu0 %201
  %v203 = vsel %vm53, %v199, 0.0
  %204 = vadd.xlane.f32.xlu0 %v203
  %v205 = vpop.xlane.xlu0 %204
  %v206 = vmul.f32 %v202, %v193
  %v207 = vmul.f32 %v205, %v193
  %v208 = vadd.f32 %v206, 1e-05
  %v209 = vadd.f32 %v207, 1e-05
  %v210 = vrsqrt.pop %v208
  %v211 = vrsqrt.pop %v209
  %v212 = vmul.f32 %v196, %v210
  %v213 = vmul.f32 %v197, %v211
  %v214 = vld [vmem:[%s5] sm:$0x1]
  %v216 = vlaneseq
  %v217 = vshrl.u32 %v216, 7
  %v218 = vsub.s32 0, %v217
  %v219 = vrot.slane %v214, %v218
  %v221 = vmul.f32 %v212, %v219
  %v222 = vmul.f32 %v213, %v219
  %v223 = vld [vmem:[%s6] sm:$0x1]
  %v225 = vlaneseq
  %v226 = vshrl.u32 %v225, 7
  %v227 = vsub.s32 0, %v226
  %v228 = vrot.slane %v223, %v227
  %v230 = vadd.f32 %v221, %v228
  %v231 = vadd.f32 %v222, %v228
  %232 = vst.msk [vmem:[%s7] sm:$0xff] %vm53, %v230
  %233 = vst.msk [vmem:[%s7 + $0x8] sm:$0xff] %vm53, %v231
  // Predicated region
  $region30: #{_lambda_.27} parent=0 // pred_check
    _
  $region31: #{_lambda_.27} parent=0 // pred_check_branch
    %235 = sbr.rel (0) target = $region33
  $region32: #{_lambda_.27} parent=0 // pred_region
    _
  $region33: #{_lambda_.27} parent=0 // pred_fallthru
    _
  // Predicated region
  $region34: #{_lambda_.27} parent=0 // pred_check
    _
  $region35: #{_lambda_.27} parent=0 // pred_check_branch
    %237 = sbr.rel (0) target = $region37
  $region36: #{_lambda_.27} parent=0 // pred_region
    _
  $region37: #{_lambda_.27} parent=0 // pred_fallthru
    _

// kernel: _lambda_.47
$region0: #{_lambda_.47}
  #allocation0 [shape = 'u32[]', space=smem, size = 0x4, offset = 0x4, fixed_abs, tag = 'smem constant byte address 0x4 - core index']
  #allocation1 [shape = 'u32[144,128]{1,0:T(1,128)}', space=vmem, size = 0x12000, scoped, tag = 'internal scratch']
  %s0 = inlined_call_operand.vmem [shape: f32[16,32], index: 0, kind: input, shape index: {}]
  %s1 = inlined_call_operand.vmem [shape: bf16[32,64], index: 1, kind: input, shape index: {}]
  %s2 = inlined_call_operand.vmem [shape: f32[1,64], index: 2, kind: input, shape index: {}]
  %s3 = inlined_call_operand.vmem [shape: bf16[64,32], index: 3, kind: input, shape index: {}]
  %s4 = inlined_call_operand.vmem [shape: f32[1,32], index: 4, kind: input, shape index: {}]
  %s5 = inlined_call_operand.vmem [shape: f32[1,32], index: 5, kind: input, shape index: {}]
  %s6 = inlined_call_operand.vmem [shape: f32[1,32], index: 6, kind: input, shape index: {}]
  %s7 = inlined_call_operand.hbm [shape: f32[16,32], index: 7, kind: output, shape index: {}]
  %s8 = sld [smem:[#allocation0]]
  $region38: #{_lambda_.47} parent=0
    _
  %s10 = ssub.s32 1, %s8
  %s11 = scalar_select 0, %s10, %s8
  $region1: #{_lambda_.47} parent=0
    #allocation2 [shape = 'u8[8192]{0}', space=vmem, size = 0x2000, scoped, tag = 'output window, operand 0, single buffered']
    #allocation3 [shape = 's32[1]{0}', space=sflag, size = 0x4, scoped, tag = 'scoped memory for _lambda_.47']
    %12 = vsyncpa [#allocation3], 0
    // Predicated region
    $region2: #{_lambda_.47} parent=1 // pred_check
      _
    $region3: #{_lambda_.47} parent=1 // pred_check_branch
      %14 = sbr.rel (0) target = $region5
    $region4: #{_lambda_.47} parent=1 // pred_region
      _
    $region5: #{_lambda_.47} parent=1 // pred_fallthru
      _
    // Predicated region
    $region6: #{_lambda_.47} parent=1 // pred_check
      _
    $region7: #{_lambda_.47} parent=1 // pred_check_branch
      %16 = sbr.rel (0) target = $region9
    $region8: #{_lambda_.47} parent=1 // pred_region
      _
    $region9: #{_lambda_.47} parent=1 // pred_fallthru
      _
    // Predicated region
    $region10: #{_lambda_.47} parent=1 // pred_check
      _
    $region11: #{_lambda_.47} parent=1 // pred_check_branch
      %18 = sbr.rel (0) target = $region13
    $region12: #{_lambda_.47} parent=1 // pred_region
      _
    $region13: #{_lambda_.47} parent=1 // pred_fallthru
      _
    // Predicated region
    $region14: #{_lambda_.47} parent=1 // pred_check
      _
    $region15: #{_lambda_.47} parent=1 // pred_check_branch
      %20 = sbr.rel (0) target = $region17
    $region16: #{_lambda_.47} parent=1 // pred_region
      _
    $region17: #{_lambda_.47} parent=1 // pred_fallthru
      _
    // Predicated region
    $region18: #{_lambda_.47} parent=1 // pred_check
      _
    $region19: #{_lambda_.47} parent=1 // pred_check_branch
      %22 = sbr.rel (0) target = $region21
    $region20: #{_lambda_.47} parent=1 // pred_region
      _
    $region21: #{_lambda_.47} parent=1 // pred_fallthru
      _
    // Predicated region
    $region22: #{_lambda_.47} parent=1 // pred_check
      _
    $region23: #{_lambda_.47} parent=1 // pred_check_branch
      %24 = sbr.rel (0) target = $region25
    $region24: #{_lambda_.47} parent=1 // pred_region
      _
    $region25: #{_lambda_.47} parent=1 // pred_fallthru
      _
    // Predicated region
    $region26: #{_lambda_.47} parent=1 // pred_check
      _
    $region27: #{_lambda_.47} parent=1 // pred_check_branch
      %26 = sbr.rel (0) target = $region29
    $region28: #{_lambda_.47} parent=1 // pred_region
      _
    $region29: #{_lambda_.47} parent=1 // pred_fallthru
      _
    %v28 = vld [vmem:[%s0] sm:$0xff]
    %v29 = vld [vmem:[%s0 + $0x8] sm:$0xff]
    %v30 = vpack.c.bf16 %v29, %v28
    %v31 = vld [vmem:[%s1] sm:$0xf]
    %v32 = vld [vmem:[%s1 + $0x4] sm:$0xf]
    %v33 = vld [vmem:[%s1 + $0x8] sm:$0xf]
    %v34 = vld [vmem:[%s1 + $0xc] sm:$0xf]
    %v35 = vld [vmem:[%s2] sm:$0x1]
    %v37 = vlaneseq
    %v38 = vshrl.u32 %v37, 7
    %v39 = vsub.s32 0, %v38
    %v40 = vrot.slane %v35, %v39
    %v46 = vunpack.c.l.b16 %v31
    %v47 = vunpack.c.l.b16 %v32
    %v48 = vunpack.c.l.b16 %v33
    %v49 = vunpack.c.l.b16 %v34
    %v50 = vpack.c.b16 %v47, %v46
    %v51 = vpack.c.b16 %v49, %v48
    %vm54 = vcmask 261120
    %v56 = vsel %vm54, %v30, 0
    %58 = vmatprep.subr.bf16.mxu0 0
    %59 = vmatpush1.bf16.msra.mxu0 0
    %60 = vmatprep.subr.bf16.mxu0 0
    %61 = vmatpush1.bf16.msra.mxu0 0
    %62 = vmatprep.subr.bf16.mxu0 0
    %63 = vmatpush1.bf16.msra.mxu0 0
    %64 = vmatprep.subr.bf16.mxu0 0
    %65 = vmatpush1.bf16.msra.mxu0 0
    %66 = vmatprep.subr.bf16.mxu0 0
    %67 = vmatpush1.bf16.msra.mxu0 0
    %68 = vmatprep.subr.bf16.mxu0 0
    %69 = vmatpush1.bf16.msra.mxu0 0
    %70 = vmatprep.subr.bf16.mxu0 0
    %71 = vmatpush1.bf16.msra.mxu0 %v51
    %72 = vmatprep.subr.bf16.mxu0 0
    %73 = vmatpush1.bf16.msra.mxu0 %v50
    %74 = vmatprep.subr.bf16.mxu0 0
    %75 = vmatpush2.bf16.msra.mxu0 0
    %76 = vmatprep.subr.bf16.mxu0 0
    %77 = vmatpush2.bf16.msra.mxu0 0
    %78 = vmatprep.subr.bf16.mxu0 0
    %79 = vmatpush2.bf16.msra.mxu0 0
    %80 = vmatprep.subr.bf16.mxu0 0
    %81 = vmatpush2.bf16.msra.mxu0 0
    %82 = vmatprep.subr.bf16.mxu0 0
    %83 = vmatpush2.bf16.msra.mxu0 0
    %84 = vmatprep.subr.bf16.mxu0 0
    %85 = vmatpush2.bf16.msra.mxu0 0
    %86 = vmatprep.subr.bf16.mxu0 0
    %87 = vmatpush2.bf16.msra.mxu0 0
    %88 = vmatprep.subr.bf16.mxu0 0
    %89 = vmatpush2.bf16.msra.mxu0 0
    %90 = vmatprep.mubr.bf16.mxu0 0
    %91 = vmatmul.mubr.bf16.gmra.mxu0 %v56
    %v92 = vpop.f32.mrf.mxu0
    %v93 = vadd.f32 %v40, %v92
    %v94 = vpop.f32.mrf.mxu0
    %v95 = vpop.f32.mrf.mxu0
    %v96 = vadd.f32 %v40, %v95
    %v97 = vpop.f32.mrf.mxu0
    %98 = vdwg.mxu0
    %v99 = vmax.f32 %v93, 0.0
    %v100 = vmax.f32 %v96, 0.0
    %v101 = vpack.c.bf16 %v100, %v99
    %v102 = vld [vmem:[%s3] sm:$0xf]
    %v103 = vld [vmem:[%s3 + $0x4] sm:$0xf]
    %v104 = vld [vmem:[%s3 + $0x8] sm:$0xf]
    %v105 = vld [vmem:[%s3 + $0xc] sm:$0xf]
    %v106 = vld [vmem:[%s3 + $0x10] sm:$0xf]
    %v107 = vld [vmem:[%s3 + $0x14] sm:$0xf]
    %v108 = vld [vmem:[%s3 + $0x18] sm:$0xf]
    %v109 = vld [vmem:[%s3 + $0x1c] sm:$0xf]
    %v110 = vld [vmem:[%s4] sm:$0x1]
    %v112 = vlaneseq
    %v113 = vshrl.u32 %v112, 7
    %v114 = vsub.s32 0, %v113
    %v115 = vrot.slane %v110, %v114
    %v125 = vunpack.c.l.b16 %v102
    %v126 = vunpack.c.l.b16 %v103
    %v127 = vunpack.c.l.b16 %v104
    %v128 = vunpack.c.l.b16 %v105
    %v129 = vunpack.c.l.b16 %v106
    %v130 = vunpack.c.l.b16 %v107
    %v131 = vunpack.c.l.b16 %v108
    %v132 = vunpack.c.l.b16 %v109
    %v133 = vpack.c.b16 %v126, %v125
    %v134 = vpack.c.b16 %v128, %v127
    %v135 = vpack.c.b16 %v130, %v129
    %v136 = vpack.c.b16 %v132, %v131
    %vm141 = vcmask 523264
    %v143 = vsel %vm141, %v101, 0
    %145 = vmatprep.subr.bf16.mxu0 0
    %146 = vmatpush1.bf16.msra.mxu0 0
    %147 = vmatprep.subr.bf16.mxu0 0
    %148 = vmatpush1.bf16.msra.mxu0 0
    %149 = vmatprep.subr.bf16.mxu0 0
    %150 = vmatpush1.bf16.msra.mxu0 0
    %151 = vmatprep.subr.bf16.mxu0 0
    %152 = vmatpush1.bf16.msra.mxu0 0
    %153 = vmatprep.subr.bf16.mxu0 0
    %154 = vmatpush1.bf16.msra.mxu0 %v136
    %155 = vmatprep.subr.bf16.mxu0 0
    %156 = vmatpush1.bf16.msra.mxu0 %v135
    %157 = vmatprep.subr.bf16.mxu0 0
    %158 = vmatpush1.bf16.msra.mxu0 %v134
    %159 = vmatprep.subr.bf16.mxu0 0
    %160 = vmatpush1.bf16.msra.mxu0 %v133
    %161 = vmatprep.subr.bf16.mxu0 0
    %162 = vmatpush2.bf16.msra.mxu0 0
    %163 = vmatprep.subr.bf16.mxu0 0
    %164 = vmatpush2.bf16.msra.mxu0 0
    %165 = vmatprep.subr.bf16.mxu0 0
    %166 = vmatpush2.bf16.msra.mxu0 0
    %167 = vmatprep.subr.bf16.mxu0 0
    %168 = vmatpush2.bf16.msra.mxu0 0
    %169 = vmatprep.subr.bf16.mxu0 0
    %170 = vmatpush2.bf16.msra.mxu0 0
    %171 = vmatprep.subr.bf16.mxu0 0
    %172 = vmatpush2.bf16.msra.mxu0 0
    %173 = vmatprep.subr.bf16.mxu0 0
    %174 = vmatpush2.bf16.msra.mxu0 0
    %175 = vmatprep.subr.bf16.mxu0 0
    %176 = vmatpush2.bf16.msra.mxu0 0
    %177 = vmatprep.mubr.bf16.mxu0 0
    %178 = vmatmul.mubr.bf16.gmra.mxu0 %v143
    %v179 = vpop.f32.mrf.mxu0
    %v180 = vadd.f32 %v115, %v179
    %v181 = vpop.f32.mrf.mxu0
    %v182 = vpop.f32.mrf.mxu0
    %v183 = vadd.f32 %v115, %v182
    %v184 = vpop.f32.mrf.mxu0
    %185 = vdwg.mxu0
    %v186 = vadd.f32 %v28, %v180
    %v187 = vadd.f32 %v29, %v183
    %v188 = vsel %vm54, %v186, 0.0
    %189 = vadd.xlane.f32.xlu0 %v188
    %v190 = vpop.xlane.xlu0 %189
    %v191 = vsel %vm54, %v187, 0.0
    %192 = vadd.xlane.f32.xlu0 %v191
    %v193 = vpop.xlane.xlu0 %192
    %v194 = vrcp.pop 32.0
    %v195 = vmul.f32 %v190, %v194
    %v196 = vmul.f32 %v193, %v194
    %v197 = vsub.f32 %v186, %v195
    %v198 = vsub.f32 %v187, %v196
    %v199 = vmul.f32 %v197, %v197
    %v200 = vmul.f32 %v198, %v198
    %v201 = vsel %vm54, %v199, 0.0
    %202 = vadd.xlane.f32.xlu0 %v201
    %v203 = vpop.xlane.xlu0 %202
    %v204 = vsel %vm54, %v200, 0.0
    %205 = vadd.xlane.f32.xlu0 %v204
    %v206 = vpop.xlane.xlu0 %205
    %v207 = vmul.f32 %v203, %v194
    %v208 = vmul.f32 %v206, %v194
    %v209 = vadd.f32 %v207, 1e-05
    %v210 = vadd.f32 %v208, 1e-05
    %v211 = vrsqrt.pop %v209
    %v212 = vrsqrt.pop %v210
    %v213 = vmul.f32 %v197, %v211
    %v214 = vmul.f32 %v198, %v212
    %v215 = vld [vmem:[%s5] sm:$0x1]
    %v217 = vlaneseq
    %v218 = vshrl.u32 %v217, 7
    %v219 = vsub.s32 0, %v218
    %v220 = vrot.slane %v215, %v219
    %v222 = vmul.f32 %v213, %v220
    %v223 = vmul.f32 %v214, %v220
    %v224 = vld [vmem:[%s6] sm:$0x1]
    %v226 = vlaneseq
    %v227 = vshrl.u32 %v226, 7
    %v228 = vsub.s32 0, %v227
    %v229 = vrot.slane %v224, %v228
    %v231 = vadd.f32 %v222, %v229
    %v232 = vadd.f32 %v223, %v229
    %233 = vst.msk [vmem:[#allocation2] sm:$0xff] %vm54, %v231
    %234 = vst.msk [vmem:[#allocation2 + $0x8] sm:$0xff] %vm54, %v232
    // Predicated region
    $region30: #{_lambda_.47} parent=1 // pred_check
      _
    $region31: #{_lambda_.47} parent=1 // pred_check_branch
      %236 = sbr.rel (0) target = $region33
    $region32: #{_lambda_.47} parent=1 // pred_region
      %s238 = ssub.s32 256, 256
      %239 = vsyncadd [#allocation3], %s238
      %s240 = sshll.u32 [#allocation2], 4
      %s241 = int_to_ptr.vmem [resolvable:$true] %s240
      %246 = dma.vmem_to_hbm [thread:$0]  %s241, 256, %s7, [#allocation3], 128, 128, 8
    $region33: #{_lambda_.47} parent=1 // pred_fallthru
      _
    // Predicated region
    $region34: #{_lambda_.47} parent=1 // pred_check
      _
    $region35: #{_lambda_.47} parent=1 // pred_check_branch
      %248 = sbr.rel (0) target = $region37
    $region36: #{_lambda_.47} parent=1 // pred_region
      %249 = dma.done [#allocation3], 256
    $region37: #{_lambda_.47} parent=1 // pred_fallthru
      _
    %250 = vsyncpa [#allocation3], 1

</llo_original>
